<compile_context>
chip_gen: v7x
topology: tpu7x:2x2x1
jax: 0.10.0
libtpu: 0.0.40
codegen_flags: <defaults>
</compile_context>

<pallas_src>
import functools

import jax
import jax.numpy as jnp
from jax import lax
from jax.experimental import pallas as pl
from jax.experimental.pallas import tpu as pltpu


# -----------------------------------------------------------------------------
# Small helpers
# -----------------------------------------------------------------------------
def _rup(n, m=128):
    return ((n + m - 1) // m) * m


def _pad2(w, rows, cols):
    r, c = w.shape
    return jnp.pad(w, ((0, rows - r), (0, cols - c)))


def _use_bf16_elementwise():
    # v6e / v7x have bf16 VALU/EUP; v5e does not (bf16 elementwise would round-
    # trip through f32 there), so gate the bf16 SiLU stage on the device kind.
    try:
        kind = jax.devices()[0].device_kind.lower()
    except Exception:  # pragma: no cover - conservative default
        return False
    return ("v6" in kind) or ("v7" in kind)


# -----------------------------------------------------------------------------
# Kernel 1: ProteinACmix FeedForward stack (3 layers, half-residual), row-tiled
# -----------------------------------------------------------------------------
def _protein_ff_stack_kernel(x_ref, w1_ref, b1_ref, w2_ref, b2_ref, o_ref,
                             *, num_layers, bf16_hid):
    # Per row: 0.5 * FF(x) + 0.5 * x, chained over `num_layers` layers.
    # FF(x) = Linear2(SiLU(Linear1(LayerNorm(x)))); dropout = identity.
    # LN gamma/beta are pre-folded into w1/b1; the 0.5 FF weight is pre-folded
    # into w2/b2, so the update is `y + 0.5 * x`.
    # TODO(synk): CNNTransBlock between layers not provided; treated as identity.
    x = x_ref[...]                                          # (tile_m, D) f32
    for l in range(num_layers):                             # static unroll (3)
        mu = jnp.mean(x, axis=-1, keepdims=True)
        msq = jnp.mean(x * x, axis=-1, keepdims=True)       # single-pass variance
        xn = (x - mu) * lax.rsqrt(msq - mu * mu + 1e-5)
        h = jnp.dot(xn.astype(jnp.bfloat16), w1_ref[l],
                    preferred_element_type=jnp.float32) + b1_ref[l]
        if bf16_hid:
            h = h.astype(jnp.bfloat16)                      # hid stage in bf16 (v6e/v7x)
            h = h * jax.nn.sigmoid(h)                       # SiLU on bf16 VALU/EUP
            y = jnp.dot(h, w2_ref[l],
                        preferred_element_type=jnp.float32) + b2_ref[l]
        else:                                               # f32 path (v5e)
            h = h * jax.nn.sigmoid(h)
            y = jnp.dot(h.astype(jnp.bfloat16), w2_ref[l],
                        preferred_element_type=jnp.float32) + b2_ref[l]
        x = y + 0.5 * x                                     # 0.5*FF folded into w2/b2
    o_ref[...] = x                                          # single wide store


def protein_ff_stack(x2d, w1, b1, w2, b2, *, tile_cap=512):
    M, D = x2d.shape
    num_layers, _, hid = w1.shape

    # Fixed, padded row tiles: rows are independent, so pad to a multiple of the
    # tile and slice back.  Guarantees >=1 full tile and a multi-step parallel
    # grid (v7x megacore) for realistic B*L.
    tile_m = min(tile_cap, _rup(M, 8))
    m_pad = pl.cdiv(M, tile_m) * tile_m
    if m_pad != M:
        x2d = jnp.pad(x2d, ((0, m_pad - M), (0, 0)))
    grid = (m_pad // tile_m,)
    const3 = lambda i: (0, 0, 0)

    flops = 2 * m_pad * num_layers * (D * hid + hid * D)
    bytes_accessed = (2 * m_pad * D * 4          # activations in + out (f32)
                      + (w1.size + w2.size) * 2  # resident bf16 weights
                      + (b1.size + b2.size) * 4)

    kern = functools.partial(_protein_ff_stack_kernel,
                             num_layers=num_layers,
                             bf16_hid=_use_bf16_elementwise())
    out = pl.pallas_call(
        kern,
        grid=grid,
        in_specs=[
            pl.BlockSpec((tile_m, D), lambda i: (i, 0)),       # activations stream
            pl.BlockSpec((num_layers, D, hid), const3),        # weights resident
            pl.BlockSpec((num_layers, 1, hid), const3),
            pl.BlockSpec((num_layers, hid, D), const3),
            pl.BlockSpec((num_layers, 1, D), const3),
        ],
        out_specs=pl.BlockSpec((tile_m, D), lambda i: (i, 0)),
        out_shape=jax.ShapeDtypeStruct((m_pad, D), jnp.float32),
        compiler_params=pltpu.CompilerParams(
            dimension_semantics=("parallel",),
            vmem_limit_bytes=32 * 1024 * 1024,
        ),
        cost_estimate=pl.CostEstimate(
            flops=flops,
            transcendentals=m_pad * num_layers * hid,
            bytes_accessed=bytes_accessed),
    )(x2d, w1, b1, w2, b2)
    return out[:M] if m_pad != M else out


# -----------------------------------------------------------------------------
# Kernel 2: drug path + pooled-feature concat + MLPDecoder, fully fused
#           (tiny VMEM footprint now that v_p only enters as its (B, D) mean)
# -----------------------------------------------------------------------------
def _drug_decoder_kernel(nodes_ref, gcnw_ref, fv_ref, egnn_ref, vpmean_ref,
                         w1, b1, g1, be1, w2, b2, g2, be2,
                         w3, b3, g3, be3, w4, b4,
                         vd_ref, f_ref, score_ref, *, n_gcn):
    B, n_d, D = fv_ref.shape
    n_egnn = n_d - n_gcn

    # --- MolecularGCN.init_transform (bias=False) ----------------------------
    # TODO(synk): dgllife GCN message-passing layers not provided; omitted.
    nodes = nodes_ref[...]                                   # (B, n_gcn, F)
    gcn = jnp.dot(nodes.reshape(B * n_gcn, nodes.shape[-1]).astype(jnp.bfloat16),
                  gcnw_ref[...], preferred_element_type=jnp.float32)
    gcn = gcn.reshape(B, n_gcn, D)

    # --- drug_encoding (EGNN) -------------------------------------------------
    # TODO(synk): EGNN(dim=128) not provided; node features passed through.
    egnn = jnp.broadcast_to(egnn_ref[...][None], (B, n_egnn, D))

    # --- concat along node axis fused with the 0.3 / 0.7 fusion ---------------
    # Two direct slice stores instead of a sublane-axis concatenate.
    fv = fv_ref[...]
    vd_gcn = 0.3 * fv[:, :n_gcn, :] + 0.7 * gcn
    vd_egnn = 0.3 * fv[:, n_gcn:, :] + 0.7 * egnn
    vd_ref[:, :n_gcn, :] = vd_gcn
    vd_ref[:, n_gcn:, :] = vd_egnn

    # --- cross_intention (BiIntention) ----------------------------------------
    # TODO(synk): BiIntention not provided; placeholder f = [mean(v_d), mean(v_p)].
    vd_mean = (jnp.sum(vd_gcn, axis=1) + jnp.sum(vd_egnn, axis=1)) * (1.0 / n_d)
    f = jnp.concatenate([vd_mean, vpmean_ref[...]], axis=-1)  # (B, 2D) lane concat
    f_ref[...] = f

    # --- MLPDecoder: bn(relu(fc)) x3 -> fc4 (weights padded to 128 lanes) -----
    # BatchNorm1d uses batch statistics (PyTorch training-mode forward).
    def lin(h, w, b):
        return jnp.dot(h.astype(jnp.bfloat16), w[...],
                       preferred_element_type=jnp.float32) + b[...]

    def bn(h, g, be):
        mu = jnp.mean(h, axis=0, keepdims=True)
        var = jnp.mean(jnp.square(h - mu), axis=0, keepdims=True)
        return g[...] * (h - mu) * lax.rsqrt(var + 1e-5) + be[...]

    h = bn(jnp.maximum(lin(f, w1, b1), 0.0), g1, be1)
    h = bn(jnp.maximum(lin(h, w2, b2), 0.0), g2, be2)
    h = bn(jnp.maximum(lin(h, w3, b3), 0.0), g3, be3)
    score_ref[...] = lin(h, w4, b4)                          # (B, 128) lane-dense


def drug_decoder_forward(drug_node_feats, gcn_w, feature_vectors, egnn_feat,
                         vp_mean, mlp):
    B, n_d, D = feature_vectors.shape
    n_gcn = drug_node_feats.shape[1]
    in_feats = drug_node_feats.shape[2]
    hid_p = mlp["w1"].shape[1]
    out_p = mlp["w3"].shape[1]
    bin_p = mlp["w4"].shape[1]

    inputs = (drug_node_feats, gcn_w, feature_vectors, egnn_feat, vp_mean,
              mlp["w1"], mlp["b1"], mlp["g1"], mlp["be1"],
              mlp["w2"], mlp["b2"], mlp["g2"], mlp["be2"],
              mlp["w3"], mlp["b3"], mlp["g3"], mlp["be3"],
              mlp["w4"], mlp["b4"])

    vmem_spec = pl.BlockSpec(memory_space=pltpu.MemorySpace.VMEM)
    flops = 2 * B * (n_gcn * in_feats * D
                     + 2 * D * hid_p + hid_p * hid_p + hid_p * out_p
                     + out_p * bin_p)
    bytes_in = sum(int(a.size) * a.dtype.itemsize for a in inputs)
    bytes_out = (B * n_d * D + B * 2 * D + B * bin_p) * 4

    kern = functools.partial(_drug_decoder_kernel, n_gcn=n_gcn)
    # TODO(synk): if this kernel ever grows, grid it over batch
    # (dimension_semantics=("parallel",)) for the v7x dual-TC; with v_p removed
    # it is tiny, so a single block is cheapest.
    return pl.pallas_call(
        kern,
        in_specs=[vmem_spec] * len(inputs),
        out_specs=(vmem_spec, vmem_spec, vmem_spec),
        out_shape=(
            jax.ShapeDtypeStruct((B, n_d, D), jnp.float32),   # v_d
            jax.ShapeDtypeStruct((B, 2 * D), jnp.float32),    # f
            jax.ShapeDtypeStruct((B, bin_p), jnp.float32),    # padded score
        ),
        cost_estimate=pl.CostEstimate(flops=flops, transcendentals=0,
                                      bytes_accessed=bytes_in + bytes_out),
        compiler_params=pltpu.CompilerParams(vmem_limit_bytes=32 * 1024 * 1024),
    )(*inputs)


# -----------------------------------------------------------------------------
# Deterministic parameter initialization (PyTorch nn.Linear-style uniform)
# -----------------------------------------------------------------------------
def init_linear(key, in_dim, out_dim, bias=True):
    kw, kb = jax.random.split(key)
    bound = 1.0 / (in_dim ** 0.5)
    w = jax.random.uniform(kw, (in_dim, out_dim), jnp.float32, -bound, bound)
    if bias:
        b = jax.random.uniform(kb, (1, out_dim), jnp.float32, -bound, bound)
    else:
        b = jnp.zeros((1, out_dim), jnp.float32)
    return w, b


def init_params(key, *, drug_in_feats, embed_dim, ff_expansion,
                num_protein_layers, mlp_in, mlp_hidden, mlp_out, binary):
    keys = jax.random.split(key, 16)
    p = {}

    # MolecularGCN.init_transform: Linear(in_feats, 128, bias=False); padding
    # zeroes the last torch output row -> last column of the (in, out) weight.
    w_gcn, _ = init_linear(keys[0], drug_in_feats, embed_dim, bias=False)
    w_gcn = w_gcn.at[:, -1].set(0.0)
    p["gcn_init_w"] = w_gcn.astype(jnp.bfloat16)             # matmul operand bf16

    # ProteinACmix FeedForwardModule layers, stacked along a leading layer axis.
    # LN affine (gamma/beta) is folded into w1/b1; 0.5 residual weight into w2/b2.
    hidden = embed_dim * ff_expansion
    w1s, b1s, w2s, b2s = [], [], [], []
    for i in range(num_protein_layers):
        k1, k2 = jax.random.split(keys[1 + i])
        gamma = jnp.ones((embed_dim,), jnp.float32)           # LN init
        beta = jnp.zeros((1, embed_dim), jnp.float32)
        w1, b1 = init_linear(k1, embed_dim, hidden)
        w2, b2 = init_linear(k2, hidden, embed_dim)
        w1f = gamma[:, None] * w1                             # diag(gamma) @ w1
        b1f = b1 + beta @ w1                                  # b1 + beta @ w1
        w2f = 0.5 * w2                                        # fold 0.5*FF(x)
        b2f = 0.5 * b2
        w1s.append(w1f); b1s.append(b1f); w2s.append(w2f); b2s.append(b2f)
    p["ff_w1"] = jnp.stack(w1s).astype(jnp.bfloat16)
    p["ff_b1"] = jnp.stack(b1s)
    p["ff_w2"] = jnp.stack(w2s).astype(jnp.bfloat16)
    p["ff_b2"] = jnp.stack(b2s)

    # MLPDecoder, zero-padded to 128-lane widths. Padded pre-activations are 0,
    # relu keeps them 0, BN maps 0 -> 0 (beta=0), so real columns are unchanged.
    hid_p, out_p, bin_p = _rup(mlp_hidden), _rup(mlp_out), _rup(binary)
    mk = jax.random.split(keys[10], 4)
    w1, b1 = init_linear(mk[0], mlp_in, mlp_hidden)
    w2, b2 = init_linear(mk[1], mlp_hidden, mlp_hidden)
    w3, b3 = init_linear(mk[2], mlp_hidden, mlp_out)
    w4, b4 = init_linear(mk[3], mlp_out, binary)
    p["mlp"] = {
        "w1": _pad2(w1, mlp_in, hid_p).astype(jnp.bfloat16), "b1": _pad2(b1, 1, hid_p),
        "g1": jnp.ones((1, hid_p), jnp.float32), "be1": jnp.zeros((1, hid_p), jnp.float32),
        "w2": _pad2(w2, hid_p, hid_p).astype(jnp.bfloat16), "b2": _pad2(b2, 1, hid_p),
        "g2": jnp.ones((1, hid_p), jnp.float32), "be2": jnp.zeros((1, hid_p), jnp.float32),
        "w3": _pad2(w3, hid_p, out_p).astype(jnp.bfloat16), "b3": _pad2(b3, 1, out_p),
        "g3": jnp.ones((1, out_p), jnp.float32), "be3": jnp.zeros((1, out_p), jnp.float32),
        "w4": _pad2(w4, out_p, bin_p).astype(jnp.bfloat16), "b4": _pad2(b4, 1, bin_p),
    }
    return p


# -----------------------------------------------------------------------------
# LDMDTI forward
# -----------------------------------------------------------------------------
def ldmdti_forward(params, feature_vectors, feature, coor, drug_node_feats,
                   v_p, protein_mask, mode="train", binary=1):
    B, _, D = feature_vectors.shape
    L = v_p.shape[1]
    del coor, protein_mask  # TODO(synk): only used inside EGNN / CNNTransBlock (not provided).

    # ---- protein_extractor (ProteinACmix FF stack, Pallas kernel 1) ----------
    x2d = v_p.astype(jnp.float32).reshape(B * L, D)
    vp2d = protein_ff_stack(x2d, params["ff_w1"], params["ff_b1"],
                            params["ff_w2"], params["ff_b2"])
    v_p_out = vp2d.reshape(B, L, D)

    # Mean-pool the protein representation in the wrapper (XLA reduction at full
    # HBM BW) so kernel 2 never touches the (B, L, D) tensor.
    vp_mean = jnp.mean(v_p_out, axis=1)                      # (B, D)

    # ---- drug path + cross-intention pooling + MLPDecoder (Pallas kernel 2) --
    egnn_feat = feature[0]          # TODO(synk): EGNN passthrough (definition not provided)
    v_d, f, score_pad = drug_decoder_forward(
        drug_node_feats, params["gcn_init_w"], feature_vectors, egnn_feat,
        vp_mean, params["mlp"])
    score = score_pad[:, :binary]
    att = None

    if mode == "train":
        return v_d, v_p_out, f, score
    elif mode == "eval":
        return v_d, v_p_out, score, att


# -----------------------------------------------------------------------------
if __name__ == "__main__":
    B = 2          # batch
    D = 128        # embedding dim (drug_embedding == protein encoder_dim)
    N_GCN = 8      # drug graph nodes per molecule
    N_EGNN = 4     # EGNN atoms
    N_D = N_GCN + N_EGNN
    L = 8          # protein sequence length
    IN_FEATS = 16  # drug node input features
    MLP_IN, MLP_HID, MLP_OUT, BINARY = 2 * D, 64, 32, 1

    key = jax.random.PRNGKey(0)
    keys = jax.random.split(key, 8)
    feature_vectors = jax.random.normal(keys[0], (B, N_D, D), jnp.float32)
    feature = jax.random.normal(keys[1], (1, N_EGNN, D), jnp.float32)
    coor = jax.random.normal(keys[2], (1, N_EGNN, 3), jnp.float32)
    drug_node_feats = jax.random.normal(keys[3], (B, N_GCN, IN_FEATS), jnp.float32)
    v_p = jax.random.normal(keys[4], (B, L, D), jnp.float32)
    protein_mask = jnp.ones((B, L), jnp.float32)

    params = init_params(
        jax.random.PRNGKey(42),
        drug_in_feats=IN_FEATS, embed_dim=D, ff_expansion=4,
        num_protein_layers=3, mlp_in=MLP_IN, mlp_hidden=MLP_HID,
        mlp_out=MLP_OUT, binary=BINARY,
    )

    v_d, v_p_out, f, score = ldmdti_forward(
        params, feature_vectors, feature, coor, drug_node_feats, v_p,
        protein_mask, mode="train", binary=BINARY,
    )
    jax.block_until_ready((v_d, v_p_out, f, score))

    assert v_d.shape == (B, N_D, D)
    assert v_p_out.shape == (B, L, D)
    assert f.shape == (B, MLP_IN)
    assert score.shape == (B, BINARY)
    assert bool(jnp.all(jnp.isfinite(v_d)))
    assert bool(jnp.all(jnp.isfinite(v_p_out)))
    assert bool(jnp.all(jnp.isfinite(score)))
    print("KERNEL_OK")
</pallas_src>

<mosaic_0001>
module attributes {stable_mosaic.version = 11 : i64} {
  func.func @_protein_ff_stack_kernel(%arg0: i32, %arg1: memref<16x128xf32, #tpu.memory_space<vmem>>, %arg2: memref<3x128x512xbf16, #tpu.memory_space<vmem>>, %arg3: memref<3x1x512xf32, #tpu.memory_space<vmem>>, %arg4: memref<3x512x128xbf16, #tpu.memory_space<vmem>>, %arg5: memref<3x1x128xf32, #tpu.memory_space<vmem>>, %arg6: memref<16x128xf32, #tpu.memory_space<vmem>>) attributes {dimension_semantics = [#tpu.dimension_semantics<parallel>], iteration_bounds = array<i64: 1>, scalar_prefetch = 0 : i64, scratch_operands = 0 : i64, tpu.core_type = #tpu.core_type<tc>, window_params = [{transform_indices = @transform_0, window_bounds = array<i64: 16, 128>}, {pipeline_mode = #tpu.pipeline_mode<synchronous>, transform_indices = @transform_1, window_bounds = array<i64: 3, 128, 512>}, {pipeline_mode = #tpu.pipeline_mode<synchronous>, transform_indices = @transform_2, window_bounds = array<i64: 3, 1, 512>}, {pipeline_mode = #tpu.pipeline_mode<synchronous>, transform_indices = @transform_3, window_bounds = array<i64: 3, 512, 128>}, {pipeline_mode = #tpu.pipeline_mode<synchronous>, transform_indices = @transform_4, window_bounds = array<i64: 3, 1, 128>}, {transform_indices = @transform_5, window_bounds = array<i64: 16, 128>}]} {
    %c0 = arith.constant 0 : index
    %c0_0 = arith.constant 0 : index
    %0 = vector.load %arg1[%c0, %c0_0] : memref<16x128xf32, #tpu.memory_space<vmem>>, vector<16x128xf32>
    %cst = arith.constant dense<0.000000e+00> : vector<16xf32>
    %1 = vector.multi_reduction <add>, %0, %cst [1] : vector<16x128xf32> to vector<16xf32>
    %2 = vector.shape_cast %1 : vector<16xf32> to vector<16x1xf32>
    %cst_1 = arith.constant 1.280000e+02 : f32
    %3 = vector.broadcast %cst_1 : f32 to vector<16x1xf32>
    %4 = arith.divf %2, %3 : vector<16x1xf32>
    %5 = arith.mulf %0, %0 : vector<16x128xf32>
    %cst_2 = arith.constant dense<0.000000e+00> : vector<16xf32>
    %6 = vector.multi_reduction <add>, %5, %cst_2 [1] : vector<16x128xf32> to vector<16xf32>
    %7 = vector.shape_cast %6 : vector<16xf32> to vector<16x1xf32>
    %cst_3 = arith.constant 1.280000e+02 : f32
    %8 = vector.broadcast %cst_3 : f32 to vector<16x1xf32>
    %9 = arith.divf %7, %8 : vector<16x1xf32>
    %10 = vector.broadcast %4 : vector<16x1xf32> to vector<16x128xf32>
    %11 = arith.subf %0, %10 : vector<16x128xf32>
    %12 = arith.mulf %4, %4 : vector<16x1xf32>
    %13 = arith.subf %9, %12 : vector<16x1xf32>
    %cst_4 = arith.constant 9.99999974E-6 : f32
    %14 = vector.broadcast %cst_4 : f32 to vector<16x1xf32>
    %15 = arith.addf %13, %14 : vector<16x1xf32>
    %16 = math.rsqrt %15 : vector<16x1xf32>
    %17 = vector.broadcast %16 : vector<16x1xf32> to vector<16x128xf32>
    %18 = arith.mulf %11, %17 : vector<16x128xf32>
    %19 = arith.truncf %18 : vector<16x128xf32> to vector<16x128xbf16>
    %c0_5 = arith.constant 0 : index
    %c0_6 = arith.constant 0 : index
    %c0_7 = arith.constant 0 : index
    %20 = vector.load %arg2[%c0_5, %c0_6, %c0_7] : memref<3x128x512xbf16, #tpu.memory_space<vmem>>, vector<1x128x512xbf16>
    %21 = vector.shape_cast %20 : vector<1x128x512xbf16> to vector<128x512xbf16>
    %cst_8 = arith.constant dense<0.000000e+00> : vector<16x512xf32>
    %22 = tpu.matmul %19, %21, %cst_8 {dimension_numbers = #tpu.dot_dimension_numbers<[1], [0], [0], [1], [0, 0, 1, 1], [], []>} : vector<16x128xbf16>, vector<128x512xbf16>, vector<16x512xf32> -> vector<16x512xf32>
    %c0_9 = arith.constant 0 : index
    %c0_10 = arith.constant 0 : index
    %c0_11 = arith.constant 0 : index
    %23 = vector.load %arg3[%c0_9, %c0_10, %c0_11] : memref<3x1x512xf32, #tpu.memory_space<vmem>>, vector<1x1x512xf32>
    %24 = vector.shape_cast %23 : vector<1x1x512xf32> to vector<1x512xf32>
    %25 = vector.broadcast %24 : vector<1x512xf32> to vector<16x512xf32>
    %26 = arith.addf %22, %25 : vector<16x512xf32>
    %27 = arith.negf %26 : vector<16x512xf32>
    %28 = math.exp %27 : vector<16x512xf32>
    %cst_12 = arith.constant 1.000000e+00 : f32
    %29 = vector.broadcast %cst_12 : f32 to vector<16x512xf32>
    %30 = arith.addf %29, %28 : vector<16x512xf32>
    %31 = arith.divf %29, %30 : vector<16x512xf32>
    %32 = arith.mulf %26, %31 : vector<16x512xf32>
    %33 = arith.truncf %32 : vector<16x512xf32> to vector<16x512xbf16>
    %c0_13 = arith.constant 0 : index
    %c0_14 = arith.constant 0 : index
    %c0_15 = arith.constant 0 : index
    %34 = vector.load %arg4[%c0_13, %c0_14, %c0_15] : memref<3x512x128xbf16, #tpu.memory_space<vmem>>, vector<1x512x128xbf16>
    %35 = vector.shape_cast %34 : vector<1x512x128xbf16> to vector<512x128xbf16>
    %cst_16 = arith.constant dense<0.000000e+00> : vector<16x128xf32>
    %36 = tpu.matmul %33, %35, %cst_16 {dimension_numbers = #tpu.dot_dimension_numbers<[1], [0], [0], [1], [0, 0, 1, 1], [], []>} : vector<16x512xbf16>, vector<512x128xbf16>, vector<16x128xf32> -> vector<16x128xf32>
    %c0_17 = arith.constant 0 : index
    %c0_18 = arith.constant 0 : index
    %c0_19 = arith.constant 0 : index
    %37 = vector.load %arg5[%c0_17, %c0_18, %c0_19] : memref<3x1x128xf32, #tpu.memory_space<vmem>>, vector<1x1x128xf32>
    %38 = vector.shape_cast %37 : vector<1x1x128xf32> to vector<1x128xf32>
    %39 = vector.broadcast %38 : vector<1x128xf32> to vector<16x128xf32>
    %40 = arith.addf %36, %39 : vector<16x128xf32>
    %cst_20 = arith.constant 5.000000e-01 : f32
    %41 = vector.broadcast %cst_20 : f32 to vector<16x128xf32>
    %42 = arith.mulf %41, %0 : vector<16x128xf32>
    %43 = arith.addf %40, %42 : vector<16x128xf32>
    %cst_21 = arith.constant dense<0.000000e+00> : vector<16xf32>
    %44 = vector.multi_reduction <add>, %43, %cst_21 [1] : vector<16x128xf32> to vector<16xf32>
    %45 = vector.shape_cast %44 : vector<16xf32> to vector<16x1xf32>
    %cst_22 = arith.constant 1.280000e+02 : f32
    %46 = vector.broadcast %cst_22 : f32 to vector<16x1xf32>
    %47 = arith.divf %45, %46 : vector<16x1xf32>
    %48 = arith.mulf %43, %43 : vector<16x128xf32>
    %cst_23 = arith.constant dense<0.000000e+00> : vector<16xf32>
    %49 = vector.multi_reduction <add>, %48, %cst_23 [1] : vector<16x128xf32> to vector<16xf32>
    %50 = vector.shape_cast %49 : vector<16xf32> to vector<16x1xf32>
    %cst_24 = arith.constant 1.280000e+02 : f32
    %51 = vector.broadcast %cst_24 : f32 to vector<16x1xf32>
    %52 = arith.divf %50, %51 : vector<16x1xf32>
    %53 = vector.broadcast %47 : vector<16x1xf32> to vector<16x128xf32>
    %54 = arith.subf %43, %53 : vector<16x128xf32>
    %55 = arith.mulf %47, %47 : vector<16x1xf32>
    %56 = arith.subf %52, %55 : vector<16x1xf32>
    %cst_25 = arith.constant 9.99999974E-6 : f32
    %57 = vector.broadcast %cst_25 : f32 to vector<16x1xf32>
    %58 = arith.addf %56, %57 : vector<16x1xf32>
    %59 = math.rsqrt %58 : vector<16x1xf32>
    %60 = vector.broadcast %59 : vector<16x1xf32> to vector<16x128xf32>
    %61 = arith.mulf %54, %60 : vector<16x128xf32>
    %62 = arith.truncf %61 : vector<16x128xf32> to vector<16x128xbf16>
    %c1 = arith.constant 1 : index
    %c0_26 = arith.constant 0 : index
    %c0_27 = arith.constant 0 : index
    %63 = vector.load %arg2[%c1, %c0_26, %c0_27] : memref<3x128x512xbf16, #tpu.memory_space<vmem>>, vector<1x128x512xbf16>
    %64 = vector.shape_cast %63 : vector<1x128x512xbf16> to vector<128x512xbf16>
    %cst_28 = arith.constant dense<0.000000e+00> : vector<16x512xf32>
    %65 = tpu.matmul %62, %64, %cst_28 {dimension_numbers = #tpu.dot_dimension_numbers<[1], [0], [0], [1], [0, 0, 1, 1], [], []>} : vector<16x128xbf16>, vector<128x512xbf16>, vector<16x512xf32> -> vector<16x512xf32>
    %c1_29 = arith.constant 1 : index
    %c0_30 = arith.constant 0 : index
    %c0_31 = arith.constant 0 : index
    %66 = vector.load %arg3[%c1_29, %c0_30, %c0_31] : memref<3x1x512xf32, #tpu.memory_space<vmem>>, vector<1x1x512xf32>
    %67 = vector.shape_cast %66 : vector<1x1x512xf32> to vector<1x512xf32>
    %68 = vector.broadcast %67 : vector<1x512xf32> to vector<16x512xf32>
    %69 = arith.addf %65, %68 : vector<16x512xf32>
    %70 = arith.negf %69 : vector<16x512xf32>
    %71 = math.exp %70 : vector<16x512xf32>
    %cst_32 = arith.constant 1.000000e+00 : f32
    %72 = vector.broadcast %cst_32 : f32 to vector<16x512xf32>
    %73 = arith.addf %72, %71 : vector<16x512xf32>
    %74 = arith.divf %72, %73 : vector<16x512xf32>
    %75 = arith.mulf %69, %74 : vector<16x512xf32>
    %76 = arith.truncf %75 : vector<16x512xf32> to vector<16x512xbf16>
    %c1_33 = arith.constant 1 : index
    %c0_34 = arith.constant 0 : index
    %c0_35 = arith.constant 0 : index
    %77 = vector.load %arg4[%c1_33, %c0_34, %c0_35] : memref<3x512x128xbf16, #tpu.memory_space<vmem>>, vector<1x512x128xbf16>
    %78 = vector.shape_cast %77 : vector<1x512x128xbf16> to vector<512x128xbf16>
    %cst_36 = arith.constant dense<0.000000e+00> : vector<16x128xf32>
    %79 = tpu.matmul %76, %78, %cst_36 {dimension_numbers = #tpu.dot_dimension_numbers<[1], [0], [0], [1], [0, 0, 1, 1], [], []>} : vector<16x512xbf16>, vector<512x128xbf16>, vector<16x128xf32> -> vector<16x128xf32>
    %c1_37 = arith.constant 1 : index
    %c0_38 = arith.constant 0 : index
    %c0_39 = arith.constant 0 : index
    %80 = vector.load %arg5[%c1_37, %c0_38, %c0_39] : memref<3x1x128xf32, #tpu.memory_space<vmem>>, vector<1x1x128xf32>
    %81 = vector.shape_cast %80 : vector<1x1x128xf32> to vector<1x128xf32>
    %82 = vector.broadcast %81 : vector<1x128xf32> to vector<16x128xf32>
    %83 = arith.addf %79, %82 : vector<16x128xf32>
    %cst_40 = arith.constant 5.000000e-01 : f32
    %84 = vector.broadcast %cst_40 : f32 to vector<16x128xf32>
    %85 = arith.mulf %84, %43 : vector<16x128xf32>
    %86 = arith.addf %83, %85 : vector<16x128xf32>
    %cst_41 = arith.constant dense<0.000000e+00> : vector<16xf32>
    %87 = vector.multi_reduction <add>, %86, %cst_41 [1] : vector<16x128xf32> to vector<16xf32>
    %88 = vector.shape_cast %87 : vector<16xf32> to vector<16x1xf32>
    %cst_42 = arith.constant 1.280000e+02 : f32
    %89 = vector.broadcast %cst_42 : f32 to vector<16x1xf32>
    %90 = arith.divf %88, %89 : vector<16x1xf32>
    %91 = arith.mulf %86, %86 : vector<16x128xf32>
    %cst_43 = arith.constant dense<0.000000e+00> : vector<16xf32>
    %92 = vector.multi_reduction <add>, %91, %cst_43 [1] : vector<16x128xf32> to vector<16xf32>
    %93 = vector.shape_cast %92 : vector<16xf32> to vector<16x1xf32>
    %cst_44 = arith.constant 1.280000e+02 : f32
    %94 = vector.broadcast %cst_44 : f32 to vector<16x1xf32>
    %95 = arith.divf %93, %94 : vector<16x1xf32>
    %96 = vector.broadcast %90 : vector<16x1xf32> to vector<16x128xf32>
    %97 = arith.subf %86, %96 : vector<16x128xf32>
    %98 = arith.mulf %90, %90 : vector<16x1xf32>
    %99 = arith.subf %95, %98 : vector<16x1xf32>
    %cst_45 = arith.constant 9.99999974E-6 : f32
    %100 = vector.broadcast %cst_45 : f32 to vector<16x1xf32>
    %101 = arith.addf %99, %100 : vector<16x1xf32>
    %102 = math.rsqrt %101 : vector<16x1xf32>
    %103 = vector.broadcast %102 : vector<16x1xf32> to vector<16x128xf32>
    %104 = arith.mulf %97, %103 : vector<16x128xf32>
    %105 = arith.truncf %104 : vector<16x128xf32> to vector<16x128xbf16>
    %c2 = arith.constant 2 : index
    %c0_46 = arith.constant 0 : index
    %c0_47 = arith.constant 0 : index
    %106 = vector.load %arg2[%c2, %c0_46, %c0_47] : memref<3x128x512xbf16, #tpu.memory_space<vmem>>, vector<1x128x512xbf16>
    %107 = vector.shape_cast %106 : vector<1x128x512xbf16> to vector<128x512xbf16>
    %cst_48 = arith.constant dense<0.000000e+00> : vector<16x512xf32>
    %108 = tpu.matmul %105, %107, %cst_48 {dimension_numbers = #tpu.dot_dimension_numbers<[1], [0], [0], [1], [0, 0, 1, 1], [], []>} : vector<16x128xbf16>, vector<128x512xbf16>, vector<16x512xf32> -> vector<16x512xf32>
    %c2_49 = arith.constant 2 : index
    %c0_50 = arith.constant 0 : index
    %c0_51 = arith.constant 0 : index
    %109 = vector.load %arg3[%c2_49, %c0_50, %c0_51] : memref<3x1x512xf32, #tpu.memory_space<vmem>>, vector<1x1x512xf32>
    %110 = vector.shape_cast %109 : vector<1x1x512xf32> to vector<1x512xf32>
    %111 = vector.broadcast %110 : vector<1x512xf32> to vector<16x512xf32>
    %112 = arith.addf %108, %111 : vector<16x512xf32>
    %113 = arith.negf %112 : vector<16x512xf32>
    %114 = math.exp %113 : vector<16x512xf32>
    %cst_52 = arith.constant 1.000000e+00 : f32
    %115 = vector.broadcast %cst_52 : f32 to vector<16x512xf32>
    %116 = arith.addf %115, %114 : vector<16x512xf32>
    %117 = arith.divf %115, %116 : vector<16x512xf32>
    %118 = arith.mulf %112, %117 : vector<16x512xf32>
    %119 = arith.truncf %118 : vector<16x512xf32> to vector<16x512xbf16>
    %c2_53 = arith.constant 2 : index
    %c0_54 = arith.constant 0 : index
    %c0_55 = arith.constant 0 : index
    %120 = vector.load %arg4[%c2_53, %c0_54, %c0_55] : memref<3x512x128xbf16, #tpu.memory_space<vmem>>, vector<1x512x128xbf16>
    %121 = vector.shape_cast %120 : vector<1x512x128xbf16> to vector<512x128xbf16>
    %cst_56 = arith.constant dense<0.000000e+00> : vector<16x128xf32>
    %122 = tpu.matmul %119, %121, %cst_56 {dimension_numbers = #tpu.dot_dimension_numbers<[1], [0], [0], [1], [0, 0, 1, 1], [], []>} : vector<16x512xbf16>, vector<512x128xbf16>, vector<16x128xf32> -> vector<16x128xf32>
    %c2_57 = arith.constant 2 : index
    %c0_58 = arith.constant 0 : index
    %c0_59 = arith.constant 0 : index
    %123 = vector.load %arg5[%c2_57, %c0_58, %c0_59] : memref<3x1x128xf32, #tpu.memory_space<vmem>>, vector<1x1x128xf32>
    %124 = vector.shape_cast %123 : vector<1x1x128xf32> to vector<1x128xf32>
    %125 = vector.broadcast %124 : vector<1x128xf32> to vector<16x128xf32>
    %126 = arith.addf %122, %125 : vector<16x128xf32>
    %cst_60 = arith.constant 5.000000e-01 : f32
    %127 = vector.broadcast %cst_60 : f32 to vector<16x128xf32>
    %128 = arith.mulf %127, %86 : vector<16x128xf32>
    %129 = arith.addf %126, %128 : vector<16x128xf32>
    %c0_61 = arith.constant 0 : index
    %c0_62 = arith.constant 0 : index
    %130 = vector.load %arg6[%c0_61, %c0_62] : memref<16x128xf32, #tpu.memory_space<vmem>>, vector<16x128xf32>
    tpu.vector_store %arg6[%c0_61, %c0_62], %129 {strides = array<i32>} : memref<16x128xf32, #tpu.memory_space<vmem>>, vector<16x128xf32>,
    return
  }
  func.func @transform_0(%arg0: i32) -> (i32, i32) {
    %c0_i32 = arith.constant 0 : i32
    %c0_i32_0 = arith.constant 0 : i32
    return %arg0, %c0_i32 : i32, i32
  }
  func.func @transform_1(%arg0: i32) -> (i32, i32, i32) {
    %c0_i32 = arith.constant 0 : i32
    %c0_i32_0 = arith.constant 0 : i32
    %c0_i32_1 = arith.constant 0 : i32
    %c0_i32_2 = arith.constant 0 : i32
    return %c0_i32, %c0_i32_0, %c0_i32_1 : i32, i32, i32
  }
  func.func @transform_2(%arg0: i32) -> (i32, i32, i32) {
    %c0_i32 = arith.constant 0 : i32
    %c0_i32_0 = arith.constant 0 : i32
    %c0_i32_1 = arith.constant 0 : i32
    %c0_i32_2 = arith.constant 0 : i32
    return %c0_i32, %c0_i32_0, %c0_i32_1 : i32, i32, i32
  }
  func.func @transform_3(%arg0: i32) -> (i32, i32, i32) {
    %c0_i32 = arith.constant 0 : i32
    %c0_i32_0 = arith.constant 0 : i32
    %c0_i32_1 = arith.constant 0 : i32
    %c0_i32_2 = arith.constant 0 : i32
    return %c0_i32, %c0_i32_0, %c0_i32_1 : i32, i32, i32
  }
  func.func @transform_4(%arg0: i32) -> (i32, i32, i32) {
    %c0_i32 = arith.constant 0 : i32
    %c0_i32_0 = arith.constant 0 : i32
    %c0_i32_1 = arith.constant 0 : i32
    %c0_i32_2 = arith.constant 0 : i32
    return %c0_i32, %c0_i32_0, %c0_i32_1 : i32, i32, i32
  }
  func.func @transform_5(%arg0: i32) -> (i32, i32) {
    %c0_i32 = arith.constant 0 : i32
    %c0_i32_0 = arith.constant 0 : i32
    return %arg0, %c0_i32 : i32, i32
  }
}

</mosaic_0001>

<llo_original>
// kernel: tpu_custom_call.1
$region0: #{tpu_custom_call.1}
  #allocation0 [shape = 'u32[]', space=smem, size = 0x4, offset = 0x4, fixed_abs, tag = 'smem constant byte address 0x4 - core index']
  #allocation1 [shape = 'u32[144,128]{1,0:T(1,128)}', space=vmem, size = 0x12000, scoped, tag = 'internal scratch']
  %s0 = inlined_call_operand.hbm [shape: f32[16,128], index: 0, kind: input, shape index: {}]
  %s1 = inlined_call_operand.hbm [shape: bf16[3,128,512], index: 1, kind: input, shape index: {}]
  %s2 = inlined_call_operand.hbm [shape: f32[3,1,512], index: 2, kind: input, shape index: {}]
  %s3 = inlined_call_operand.hbm [shape: bf16[3,512,128], index: 3, kind: input, shape index: {}]
  %s4 = inlined_call_operand.vmem [shape: f32[3,1,128], index: 4, kind: input, shape index: {}]
  %s5 = inlined_call_operand.hbm [shape: f32[16,128], index: 5, kind: output, shape index: {}]
  %s6 = sld [smem:[#allocation0]]
  $region46: #{tpu_custom_call.1} parent=0
    _
  %s8 = ssub.s32 1, %s6
  %s9 = scalar_select 0, %s8, %s6
  $region1: #{tpu_custom_call.1} parent=0
    #allocation2 [shape = 'u8[8192]{0}', space=vmem, size = 0x2000, scoped, tag = 'input window, operand 0, single buffered']
    #allocation3 [shape = 's32[1]{0}', space=sflag, size = 0x4, scoped, tag = 'scoped memory for tpu_custom_call.1']
    #allocation4 [shape = 's32[1]{0}', space=sflag, size = 0x4, scoped, tag = 'scoped memory for tpu_custom_call.1']
    #allocation5 [shape = 'u8[393216]{0}', space=vmem, size = 0x60000, scoped, tag = 'input window, operand 1, single buffered']
    #allocation6 [shape = 's32[1]{0}', space=sflag, size = 0x4, scoped, tag = 'scoped memory for tpu_custom_call.1']
    #allocation7 [shape = 'u8[6144]{0}', space=vmem, size = 0x1800, scoped, tag = 'input window, operand 2, single buffered']
    #allocation8 [shape = 'u8[393216]{0}', space=vmem, size = 0x60000, scoped, tag = 'input window, operand 3, single buffered']
    #allocation9 [shape = 's32[1]{0}', space=sflag, size = 0x4, scoped, tag = 'scoped memory for tpu_custom_call.1']
    #allocation10 [shape = 'u8[8192]{0}', space=vmem, size = 0x2000, scoped, tag = 'output window, operand 0, single buffered']
    %10 = vsyncpa [#allocation3], 0
    %11 = vsyncpa [#allocation6], 0
    %12 = vsyncpa [#allocation9], 0
    %13 = vsyncpa [#allocation4], 0
    // Predicated region
    $region2: #{tpu_custom_call.1} parent=1 // pred_check
      _
    $region3: #{tpu_custom_call.1} parent=1 // pred_check_branch
      %15 = sbr.rel (0) target = $region5
    $region4: #{tpu_custom_call.1} parent=1 // pred_region
      %s17 = ssub.s32 256, 256
      %18 = vsyncadd [#allocation3], %s17
      %s19 = sshll.u32 [#allocation2], 4
      %s20 = int_to_ptr.vmem [resolvable:$true] %s19
      %25 = dma.hbm_to_vmem [thread:$0]  %s0, 256, %s20, [#allocation3], 128, 128, 8
    $region5: #{tpu_custom_call.1} parent=1 // pred_fallthru
      _
    // Predicated region
    $region6: #{tpu_custom_call.1} parent=1 // pred_check
      _
    $region7: #{tpu_custom_call.1} parent=1 // pred_check_branch
      %27 = sbr.rel (0) target = $region9
    $region8: #{tpu_custom_call.1} parent=1 // pred_region
      %s29 = ssub.s32 12288, 12288
      %30 = vsyncadd [#allocation6], %s29
      %s31 = sshll.u32 [#allocation5], 4
      %s32 = int_to_ptr.vmem [resolvable:$true] %s31
      %37 = dma.hbm_to_vmem [thread:$0]  %s1, 12288, %s32, [#allocation6], 256, 256, 16
    $region9: #{tpu_custom_call.1} parent=1 // pred_fallthru
      _
    // Predicated region
    $region10: #{tpu_custom_call.1} parent=1 // pred_check
      _
    $region11: #{tpu_custom_call.1} parent=1 // pred_check_branch
      %39 = sbr.rel (0) target = $region13
    $region12: #{tpu_custom_call.1} parent=1 // pred_region
      %s41 = ssub.s32 192, 192
      %42 = vsyncadd [#allocation6], %s41
      %s43 = sshll.u32 [#allocation7], 4
      %s44 = int_to_ptr.vmem [resolvable:$true] %s43
      %49 = dma.hbm_to_vmem [thread:$0]  %s2, 192, %s44, [#allocation6], 64, 64, 4
    $region13: #{tpu_custom_call.1} parent=1 // pred_fallthru
      _
    // Predicated region
    $region14: #{tpu_custom_call.1} parent=1 // pred_check
      _
    $region15: #{tpu_custom_call.1} parent=1 // pred_check_branch
      %51 = sbr.rel (0) target = $region17
    $region16: #{tpu_custom_call.1} parent=1 // pred_region
      %s53 = ssub.s32 12288, 12288
      %54 = vsyncadd [#allocation9], %s53
      %s55 = sshll.u32 [#allocation8], 4
      %s56 = int_to_ptr.vmem [resolvable:$true] %s55
      %61 = dma.hbm_to_vmem [thread:$0]  %s3, 12288, %s56, [#allocation9], 64, 64, 4
    $region17: #{tpu_custom_call.1} parent=1 // pred_fallthru
      _
    // Predicated region
    $region18: #{tpu_custom_call.1} parent=1 // pred_check
      _
    $region19: #{tpu_custom_call.1} parent=1 // pred_check_branch
      %63 = sbr.rel (0) target = $region21
    $region20: #{tpu_custom_call.1} parent=1 // pred_region
      _
    $region21: #{tpu_custom_call.1} parent=1 // pred_fallthru
      _
    // Predicated region
    $region22: #{tpu_custom_call.1} parent=1 // pred_check
      _
    $region23: #{tpu_custom_call.1} parent=1 // pred_check_branch
      %65 = sbr.rel (0) target = $region25
    $region24: #{tpu_custom_call.1} parent=1 // pred_region
      %66 = dma.done [#allocation3], 256
    $region25: #{tpu_custom_call.1} parent=1 // pred_fallthru
      _
    // Predicated region
    $region26: #{tpu_custom_call.1} parent=1 // pred_check
      _
    $region27: #{tpu_custom_call.1} parent=1 // pred_check_branch
      %68 = sbr.rel (0) target = $region29
    $region28: #{tpu_custom_call.1} parent=1 // pred_region
      %69 = dma.done [#allocation6], 12288
    $region29: #{tpu_custom_call.1} parent=1 // pred_fallthru
      _
    // Predicated region
    $region30: #{tpu_custom_call.1} parent=1 // pred_check
      _
    $region31: #{tpu_custom_call.1} parent=1 // pred_check_branch
      %71 = sbr.rel (0) target = $region33
    $region32: #{tpu_custom_call.1} parent=1 // pred_region
      %72 = dma.done [#allocation6], 192
    $region33: #{tpu_custom_call.1} parent=1 // pred_fallthru
      _
    // Predicated region
    $region34: #{tpu_custom_call.1} parent=1 // pred_check
      _
    $region35: #{tpu_custom_call.1} parent=1 // pred_check_branch
      %74 = sbr.rel (0) target = $region37
    $region36: #{tpu_custom_call.1} parent=1 // pred_region
      %75 = dma.done [#allocation9], 12288
    $region37: #{tpu_custom_call.1} parent=1 // pred_fallthru
      _
    %v77 = vld [vmem:[#allocation2] sm:$0xff]
    %v78 = vld [vmem:[#allocation2 + $0x8] sm:$0xff]
    %79 = vadd.xlane.f32.xlu0 %v77
    %v80 = vpop.xlane.xlu0 %79
    %81 = vadd.xlane.f32.xlu0 %v78
    %v82 = vpop.xlane.xlu0 %81
    %v83 = vrcp.pop 128.0
    %v84 = vmul.f32 %v80, %v83
    %v85 = vmul.f32 %v82, %v83
    %v86 = vmul.f32 %v77, %v77
    %v87 = vmul.f32 %v78, %v78
    %88 = vadd.xlane.f32.xlu0 %v86
    %v89 = vpop.xlane.xlu0 %88
    %90 = vadd.xlane.f32.xlu0 %v87
    %v91 = vpop.xlane.xlu0 %90
    %v92 = vmul.f32 %v89, %v83
    %v93 = vmul.f32 %v91, %v83
    %v94 = vsub.f32 %v77, %v84
    %v95 = vsub.f32 %v78, %v85
    %v96 = vmul.f32 %v84, %v84
    %v97 = vmul.f32 %v85, %v85
    %v98 = vsub.f32 %v92, %v96
    %v99 = vsub.f32 %v93, %v97
    %v100 = vadd.f32 %v98, 1e-05
    %v101 = vadd.f32 %v99, 1e-05
    %v102 = vrsqrt.pop %v100
    %v103 = vrsqrt.pop %v101
    %v104 = vmul.f32 %v94, %v102
    %v105 = vmul.f32 %v95, %v103
    %v106 = vpack.c.bf16 %v105, %v104
    %v107 = vld [vmem:[#allocation5] sm:$0xff]
    %v108 = vld [vmem:[#allocation5 + $0x8] sm:$0xff]
    %v109 = vld [vmem:[#allocation5 + $0x10] sm:$0xff]
    %v110 = vld [vmem:[#allocation5 + $0x18] sm:$0xff]
    %v111 = vld [vmem:[#allocation5 + $0x20] sm:$0xff]
    %v112 = vld [vmem:[#allocation5 + $0x28] sm:$0xff]
    %v113 = vld [vmem:[#allocation5 + $0x30] sm:$0xff]
    %v114 = vld [vmem:[#allocation5 + $0x38] sm:$0xff]
    %v115 = vld [vmem:[#allocation5 + $0x40] sm:$0xff]
    %v116 = vld [vmem:[#allocation5 + $0x48] sm:$0xff]
    %v117 = vld [vmem:[#allocation5 + $0x50] sm:$0xff]
    %v118 = vld [vmem:[#allocation5 + $0x58] sm:$0xff]
    %v119 = vld [vmem:[#allocation5 + $0x60] sm:$0xff]
    %v120 = vld [vmem:[#allocation5 + $0x68] sm:$0xff]
    %v121 = vld [vmem:[#allocation5 + $0x70] sm:$0xff]
    %v122 = vld [vmem:[#allocation5 + $0x78] sm:$0xff]
    %v123 = vld [vmem:[#allocation5 + $0x80] sm:$0xff]
    %v124 = vld [vmem:[#allocation5 + $0x88] sm:$0xff]
    %v125 = vld [vmem:[#allocation5 + $0x90] sm:$0xff]
    %v126 = vld [vmem:[#allocation5 + $0x98] sm:$0xff]
    %v127 = vld [vmem:[#allocation5 + $0xa0] sm:$0xff]
    %v128 = vld [vmem:[#allocation5 + $0xa8] sm:$0xff]
    %v129 = vld [vmem:[#allocation5 + $0xb0] sm:$0xff]
    %v130 = vld [vmem:[#allocation5 + $0xb8] sm:$0xff]
    %v131 = vld [vmem:[#allocation5 + $0xc0] sm:$0xff]
    %v132 = vld [vmem:[#allocation5 + $0xc8] sm:$0xff]
    %v133 = vld [vmem:[#allocation5 + $0xd0] sm:$0xff]
    %v134 = vld [vmem:[#allocation5 + $0xd8] sm:$0xff]
    %v135 = vld [vmem:[#allocation5 + $0xe0] sm:$0xff]
    %v136 = vld [vmem:[#allocation5 + $0xe8] sm:$0xff]
    %v137 = vld [vmem:[#allocation5 + $0xf0] sm:$0xff]
    %v138 = vld [vmem:[#allocation5 + $0xf8] sm:$0xff]
    %v139 = vld [vmem:[#allocation7] sm:$0xf]
    %v141 = vlaneseq
    %v142 = vshrl.u32 %v141, 7
    %v143 = vsub.s32 0, %v142
    %v144 = vrot.slane %v139, %v143
    %v145 = vlaneseq
    %v146 = vshrl.u32 %v145, 7
    %v147 = vsub.s32 1, %v146
    %v148 = vrot.slane %v139, %v147
    %v149 = vlaneseq
    %v150 = vshrl.u32 %v149, 7
    %v151 = vsub.s32 2, %v150
    %v152 = vrot.slane %v139, %v151
    %v153 = vlaneseq
    %v154 = vshrl.u32 %v153, 7
    %v155 = vsub.s32 3, %v154
    %v156 = vrot.slane %v139, %v155
    %v193 = vunpack.c.l.b16 %v107
    %v194 = vunpack.c.h.b16 %v107
    %v195 = vunpack.c.l.b16 %v108
    %v196 = vunpack.c.h.b16 %v108
    %v197 = vunpack.c.l.b16 %v109
    %v198 = vunpack.c.h.b16 %v109
    %v199 = vunpack.c.l.b16 %v110
    %v200 = vunpack.c.h.b16 %v110
    %v201 = vunpack.c.l.b16 %v111
    %v202 = vunpack.c.h.b16 %v111
    %v203 = vunpack.c.l.b16 %v112
    %v204 = vunpack.c.h.b16 %v112
    %v205 = vunpack.c.l.b16 %v113
    %v206 = vunpack.c.h.b16 %v113
    %v207 = vunpack.c.l.b16 %v114
    %v208 = vunpack.c.h.b16 %v114
    %v209 = vunpack.c.l.b16 %v115
    %v210 = vunpack.c.h.b16 %v115
    %v211 = vunpack.c.l.b16 %v116
    %v212 = vunpack.c.h.b16 %v116
    %v213 = vunpack.c.l.b16 %v117
    %v214 = vunpack.c.h.b16 %v117
    %v215 = vunpack.c.l.b16 %v118
    %v216 = vunpack.c.h.b16 %v118
    %v217 = vunpack.c.l.b16 %v119
    %v218 = vunpack.c.h.b16 %v119
    %v219 = vunpack.c.l.b16 %v120
    %v220 = vunpack.c.h.b16 %v120
    %v221 = vunpack.c.l.b16 %v121
    %v222 = vunpack.c.h.b16 %v121
    %v223 = vunpack.c.l.b16 %v122
    %v224 = vunpack.c.h.b16 %v122
    %v225 = vunpack.c.l.b16 %v123
    %v226 = vunpack.c.h.b16 %v123
    %v227 = vunpack.c.l.b16 %v124
    %v228 = vunpack.c.h.b16 %v124
    %v229 = vunpack.c.l.b16 %v125
    %v230 = vunpack.c.h.b16 %v125
    %v231 = vunpack.c.l.b16 %v126
    %v232 = vunpack.c.h.b16 %v126
    %v233 = vunpack.c.l.b16 %v127
    %v234 = vunpack.c.h.b16 %v127
    %v235 = vunpack.c.l.b16 %v128
    %v236 = vunpack.c.h.b16 %v128
    %v237 = vunpack.c.l.b16 %v129
    %v238 = vunpack.c.h.b16 %v129
    %v239 = vunpack.c.l.b16 %v130
    %v240 = vunpack.c.h.b16 %v130
    %v241 = vunpack.c.l.b16 %v131
    %v242 = vunpack.c.h.b16 %v131
    %v243 = vunpack.c.l.b16 %v132
    %v244 = vunpack.c.h.b16 %v132
    %v245 = vunpack.c.l.b16 %v133
    %v246 = vunpack.c.h.b16 %v133
    %v247 = vunpack.c.l.b16 %v134
    %v248 = vunpack.c.h.b16 %v134
    %v249 = vunpack.c.l.b16 %v135
    %v250 = vunpack.c.h.b16 %v135
    %v251 = vunpack.c.l.b16 %v136
    %v252 = vunpack.c.h.b16 %v136
    %v253 = vunpack.c.l.b16 %v137
    %v254 = vunpack.c.h.b16 %v137
    %v255 = vunpack.c.l.b16 %v138
    %v256 = vunpack.c.h.b16 %v138
    %v257 = vpack.c.b16 %v197, %v193
    %v258 = vpack.c.b16 %v198, %v194
    %v259 = vpack.c.b16 %v199, %v195
    %v260 = vpack.c.b16 %v200, %v196
    %v261 = vpack.c.b16 %v205, %v201
    %v262 = vpack.c.b16 %v206, %v202
    %v263 = vpack.c.b16 %v207, %v203
    %v264 = vpack.c.b16 %v208, %v204
    %v265 = vpack.c.b16 %v213, %v209
    %v266 = vpack.c.b16 %v214, %v210
    %v267 = vpack.c.b16 %v215, %v211
    %v268 = vpack.c.b16 %v216, %v212
    %v269 = vpack.c.b16 %v221, %v217
    %v270 = vpack.c.b16 %v222, %v218
    %v271 = vpack.c.b16 %v223, %v219
    %v272 = vpack.c.b16 %v224, %v220
    %v273 = vpack.c.b16 %v229, %v225
    %v274 = vpack.c.b16 %v230, %v226
    %v275 = vpack.c.b16 %v231, %v227
    %v276 = vpack.c.b16 %v232, %v228
    %v277 = vpack.c.b16 %v237, %v233
    %v278 = vpack.c.b16 %v238, %v234
    %v279 = vpack.c.b16 %v239, %v235
    %v280 = vpack.c.b16 %v240, %v236
    %v281 = vpack.c.b16 %v245, %v241
    %v282 = vpack.c.b16 %v246, %v242
    %v283 = vpack.c.b16 %v247, %v243
    %v284 = vpack.c.b16 %v248, %v244
    %v285 = vpack.c.b16 %v253, %v249
    %v286 = vpack.c.b16 %v254, %v250
    %v287 = vpack.c.b16 %v255, %v251
    %v288 = vpack.c.b16 %v256, %v252
    %321 = vmatprep.subr.bf16.mxu0 %v258
    %322 = vmatpush1.bf16.msra.mxu0 %v257
    %323 = vmatprep.subr.bf16.mxu0 %v262
    %324 = vmatpush1.bf16.msra.mxu0 %v261
    %325 = vmatprep.subr.bf16.mxu0 %v266
    %326 = vmatpush1.bf16.msra.mxu0 %v265
    %327 = vmatprep.subr.bf16.mxu0 %v270
    %328 = vmatpush1.bf16.msra.mxu0 %v269
    %329 = vmatprep.subr.bf16.mxu0 %v274
    %330 = vmatpush1.bf16.msra.mxu0 %v273
    %331 = vmatprep.subr.bf16.mxu0 %v278
    %332 = vmatpush1.bf16.msra.mxu0 %v277
    %333 = vmatprep.subr.bf16.mxu0 %v282
    %334 = vmatpush1.bf16.msra.mxu0 %v281
    %335 = vmatprep.subr.bf16.mxu0 %v286
    %336 = vmatpush1.bf16.msra.mxu0 %v285
    %337 = vmatprep.subr.bf16.mxu0 0
    %338 = vmatpush1.bf16.msra.mxu0 0
    %339 = vmatprep.subr.bf16.mxu0 0
    %340 = vmatpush1.bf16.msra.mxu0 0
    %341 = vmatprep.subr.bf16.mxu0 0
    %342 = vmatpush1.bf16.msra.mxu0 0
    %343 = vmatprep.subr.bf16.mxu0 0
    %344 = vmatpush1.bf16.msra.mxu0 0
    %345 = vmatprep.subr.bf16.mxu0 0
    %346 = vmatpush1.bf16.msra.mxu0 0
    %347 = vmatprep.subr.bf16.mxu0 0
    %348 = vmatpush1.bf16.msra.mxu0 0
    %349 = vmatprep.subr.bf16.mxu0 0
    %350 = vmatpush1.bf16.msra.mxu0 0
    %351 = vmatprep.subr.bf16.mxu0 0
    %352 = vmatpush1.bf16.msra.mxu0 0
    %353 = vmatprep.mubr.bf16.mxu0 0
    %354 = vmatmul.mubr.bf16.gmra.mrb[0].mxu0 %v106
    %v355 = vpop.f32.mrb[0].mxu0
    %v356 = vadd.f32 %v144, %v355
    %v357 = vpop.f32.mrb[0].mxu0
    %v358 = vadd.f32 %v148, %v357
    %v359 = vpop.f32.mrb[0].mxu0
    %v360 = vadd.f32 %v144, %v359
    %v361 = vpop.f32.mrb[0].mxu0
    %v362 = vadd.f32 %v148, %v361
    %363 = vdwg.mxu0
    %364 = vmatprep.subr.bf16.mxu0 %v260
    %365 = vmatpush1.bf16.msra.mxu0 %v259
    %366 = vmatprep.subr.bf16.mxu0 %v264
    %367 = vmatpush1.bf16.msra.mxu0 %v263
    %368 = vmatprep.subr.bf16.mxu0 %v268
    %369 = vmatpush1.bf16.msra.mxu0 %v267
    %370 = vmatprep.subr.bf16.mxu0 %v272
    %371 = vmatpush1.bf16.msra.mxu0 %v271
    %372 = vmatprep.subr.bf16.mxu0 %v276
    %373 = vmatpush1.bf16.msra.mxu0 %v275
    %374 = vmatprep.subr.bf16.mxu0 %v280
    %375 = vmatpush1.bf16.msra.mxu0 %v279
    %376 = vmatprep.subr.bf16.mxu0 %v284
    %377 = vmatpush1.bf16.msra.mxu0 %v283
    %378 = vmatprep.subr.bf16.mxu0 %v288
    %379 = vmatpush1.bf16.msra.mxu0 %v287
    %380 = vmatprep.subr.bf16.mxu0 0
    %381 = vmatpush1.bf16.msra.mxu0 0
    %382 = vmatprep.subr.bf16.mxu0 0
    %383 = vmatpush1.bf16.msra.mxu0 0
    %384 = vmatprep.subr.bf16.mxu0 0
    %385 = vmatpush1.bf16.msra.mxu0 0
    %386 = vmatprep.subr.bf16.mxu0 0
    %387 = vmatpush1.bf16.msra.mxu0 0
    %388 = vmatprep.subr.bf16.mxu0 0
    %389 = vmatpush1.bf16.msra.mxu0 0
    %390 = vmatprep.subr.bf16.mxu0 0
    %391 = vmatpush1.bf16.msra.mxu0 0
    %392 = vmatprep.subr.bf16.mxu0 0
    %393 = vmatpush1.bf16.msra.mxu0 0
    %394 = vmatprep.subr.bf16.mxu0 0
    %395 = vmatpush1.bf16.msra.mxu0 0
    %396 = vmatprep.mubr.bf16.mxu0 0
    %397 = vmatmul.mubr.bf16.gmra.mrb[0].mxu0 %v106
    %v398 = vpop.f32.mrb[0].mxu0
    %v399 = vadd.f32 %v152, %v398
    %v400 = vpop.f32.mrb[0].mxu0
    %v401 = vadd.f32 %v156, %v400
    %v402 = vpop.f32.mrb[0].mxu0
    %v403 = vadd.f32 %v152, %v402
    %v404 = vpop.f32.mrb[0].mxu0
    %v405 = vadd.f32 %v156, %v404
    %406 = vdwg.mxu0
    %v407 = vxor.u32 %v356, 2147483648
    %v408 = vxor.u32 %v358, 2147483648
    %v409 = vxor.u32 %v399, 2147483648
    %v410 = vxor.u32 %v401, 2147483648
    %v411 = vxor.u32 %v360, 2147483648
    %v412 = vxor.u32 %v362, 2147483648
    %v413 = vxor.u32 %v403, 2147483648
    %v414 = vxor.u32 %v405, 2147483648
    %v415 = vmul.f32 %v407, 1.442695
    %v416 = vpow.pop %v415
    %v417 = vmul.f32 %v408, 1.442695
    %v418 = vpow.pop %v417
    %v419 = vmul.f32 %v409, 1.442695
    %v420 = vpow.pop %v419
    %v421 = vmul.f32 %v410, 1.442695
    %v422 = vpow.pop %v421
    %v423 = vmul.f32 %v411, 1.442695
    %v424 = vpow.pop %v423
    %v425 = vmul.f32 %v412, 1.442695
    %v426 = vpow.pop %v425
    %v427 = vmul.f32 %v413, 1.442695
    %v428 = vpow.pop %v427
    %v429 = vmul.f32 %v414, 1.442695
    %v430 = vpow.pop %v429
    %v431 = vadd.f32 %v416, 1.0
    %v432 = vadd.f32 %v418, 1.0
    %v433 = vadd.f32 %v420, 1.0
    %v434 = vadd.f32 %v422, 1.0
    %v435 = vadd.f32 %v424, 1.0
    %v436 = vadd.f32 %v426, 1.0
    %v437 = vadd.f32 %v428, 1.0
    %v438 = vadd.f32 %v430, 1.0
    %v439 = vrcp.pop %v431
    %v440 = vmul.f32 1.0, %v439
    %v441 = vrcp.pop %v432
    %v442 = vmul.f32 1.0, %v441
    %v443 = vrcp.pop %v433
    %v444 = vmul.f32 1.0, %v443
    %v445 = vrcp.pop %v434
    %v446 = vmul.f32 1.0, %v445
    %v447 = vrcp.pop %v435
    %v448 = vmul.f32 1.0, %v447
    %v449 = vrcp.pop %v436
    %v450 = vmul.f32 1.0, %v449
    %v451 = vrcp.pop %v437
    %v452 = vmul.f32 1.0, %v451
    %v453 = vrcp.pop %v438
    %v454 = vmul.f32 1.0, %v453
    %v455 = vmul.f32 %v356, %v440
    %v456 = vmul.f32 %v358, %v442
    %v457 = vmul.f32 %v399, %v444
    %v458 = vmul.f32 %v401, %v446
    %v459 = vmul.f32 %v360, %v448
    %v460 = vmul.f32 %v362, %v450
    %v461 = vmul.f32 %v403, %v452
    %v462 = vmul.f32 %v405, %v454
    %v463 = vpack.c.bf16 %v459, %v455
    %v464 = vpack.c.bf16 %v460, %v456
    %v465 = vpack.c.bf16 %v461, %v457
    %v466 = vpack.c.bf16 %v462, %v458
    %v467 = vld [vmem:[#allocation8] sm:$0xf]
    %v468 = vld [vmem:[#allocation8 + $0x4] sm:$0xf]
    %v469 = vld [vmem:[#allocation8 + $0x8] sm:$0xf]
    %v470 = vld [vmem:[#allocation8 + $0xc] sm:$0xf]
    %v471 = vld [vmem:[#allocation8 + $0x10] sm:$0xf]
    %v472 = vld [vmem:[#allocation8 + $0x14] sm:$0xf]
    %v473 = vld [vmem:[#allocation8 + $0x18] sm:$0xf]
    %v474 = vld [vmem:[#allocation8 + $0x1c] sm:$0xf]
    %v475 = vld [vmem:[#allocation8 + $0x20] sm:$0xf]
    %v476 = vld [vmem:[#allocation8 + $0x24] sm:$0xf]
    %v477 = vld [vmem:[#allocation8 + $0x28] sm:$0xf]
    %v478 = vld [vmem:[#allocation8 + $0x2c] sm:$0xf]
    %v479 = vld [vmem:[#allocation8 + $0x30] sm:$0xf]
    %v480 = vld [vmem:[#allocation8 + $0x34] sm:$0xf]
    %v481 = vld [vmem:[#allocation8 + $0x38] sm:$0xf]
    %v482 = vld [vmem:[#allocation8 + $0x3c] sm:$0xf]
    %v483 = vld [vmem:[#allocation8 + $0x40] sm:$0xf]
    %v484 = vld [vmem:[#allocation8 + $0x44] sm:$0xf]
    %v485 = vld [vmem:[#allocation8 + $0x48] sm:$0xf]
    %v486 = vld [vmem:[#allocation8 + $0x4c] sm:$0xf]
    %v487 = vld [vmem:[#allocation8 + $0x50] sm:$0xf]
    %v488 = vld [vmem:[#allocation8 + $0x54] sm:$0xf]
    %v489 = vld [vmem:[#allocation8 + $0x58] sm:$0xf]
    %v490 = vld [vmem:[#allocation8 + $0x5c] sm:$0xf]
    %v491 = vld [vmem:[#allocation8 + $0x60] sm:$0xf]
    %v492 = vld [vmem:[#allocation8 + $0x64] sm:$0xf]
    %v493 = vld [vmem:[#allocation8 + $0x68] sm:$0xf]
    %v494 = vld [vmem:[#allocation8 + $0x6c] sm:$0xf]
    %v495 = vld [vmem:[#allocation8 + $0x70] sm:$0xf]
    %v496 = vld [vmem:[#allocation8 + $0x74] sm:$0xf]
    %v497 = vld [vmem:[#allocation8 + $0x78] sm:$0xf]
    %v498 = vld [vmem:[#allocation8 + $0x7c] sm:$0xf]
    %v499 = vld [vmem:[#allocation8 + $0x80] sm:$0xf]
    %v500 = vld [vmem:[#allocation8 + $0x84] sm:$0xf]
    %v501 = vld [vmem:[#allocation8 + $0x88] sm:$0xf]
    %v502 = vld [vmem:[#allocation8 + $0x8c] sm:$0xf]
    %v503 = vld [vmem:[#allocation8 + $0x90] sm:$0xf]
    %v504 = vld [vmem:[#allocation8 + $0x94] sm:$0xf]
    %v505 = vld [vmem:[#allocation8 + $0x98] sm:$0xf]
    %v506 = vld [vmem:[#allocation8 + $0x9c] sm:$0xf]
    %v507 = vld [vmem:[#allocation8 + $0xa0] sm:$0xf]
    %v508 = vld [vmem:[#allocation8 + $0xa4] sm:$0xf]
    %v509 = vld [vmem:[#allocation8 + $0xa8] sm:$0xf]
    %v510 = vld [vmem:[#allocation8 + $0xac] sm:$0xf]
    %v511 = vld [vmem:[#allocation8 + $0xb0] sm:$0xf]
    %v512 = vld [vmem:[#allocation8 + $0xb4] sm:$0xf]
    %v513 = vld [vmem:[#allocation8 + $0xb8] sm:$0xf]
    %v514 = vld [vmem:[#allocation8 + $0xbc] sm:$0xf]
    %v515 = vld [vmem:[#allocation8 + $0xc0] sm:$0xf]
    %v516 = vld [vmem:[#allocation8 + $0xc4] sm:$0xf]
    %v517 = vld [vmem:[#allocation8 + $0xc8] sm:$0xf]
    %v518 = vld [vmem:[#allocation8 + $0xcc] sm:$0xf]
    %v519 = vld [vmem:[#allocation8 + $0xd0] sm:$0xf]
    %v520 = vld [vmem:[#allocation8 + $0xd4] sm:$0xf]
    %v521 = vld [vmem:[#allocation8 + $0xd8] sm:$0xf]
    %v522 = vld [vmem:[#allocation8 + $0xdc] sm:$0xf]
    %v523 = vld [vmem:[#allocation8 + $0xe0] sm:$0xf]
    %v524 = vld [vmem:[#allocation8 + $0xe4] sm:$0xf]
    %v525 = vld [vmem:[#allocation8 + $0xe8] sm:$0xf]
    %v526 = vld [vmem:[#allocation8 + $0xec] sm:$0xf]
    %v527 = vld [vmem:[#allocation8 + $0xf0] sm:$0xf]
    %v528 = vld [vmem:[#allocation8 + $0xf4] sm:$0xf]
    %v529 = vld [vmem:[#allocation8 + $0xf8] sm:$0xf]
    %v530 = vld [vmem:[#allocation8 + $0xfc] sm:$0xf]
    %v531 = vld [vmem:[%s4] sm:$0x1]
    %v533 = vlaneseq
    %v534 = vshrl.u32 %v533, 7
    %v535 = vsub.s32 0, %v534
    %v536 = vrot.slane %v531, %v535
    %v602 = vunpack.c.l.b16 %v467
    %v603 = vunpack.c.l.b16 %v468
    %v604 = vunpack.c.l.b16 %v469
    %v605 = vunpack.c.l.b16 %v470
    %v606 = vunpack.c.l.b16 %v471
    %v607 = vunpack.c.l.b16 %v472
    %v608 = vunpack.c.l.b16 %v473
    %v609 = vunpack.c.l.b16 %v474
    %v610 = vunpack.c.l.b16 %v475
    %v611 = vunpack.c.l.b16 %v476
    %v612 = vunpack.c.l.b16 %v477
    %v613 = vunpack.c.l.b16 %v478
    %v614 = vunpack.c.l.b16 %v479
    %v615 = vunpack.c.l.b16 %v480
    %v616 = vunpack.c.l.b16 %v481
    %v617 = vunpack.c.l.b16 %v482
    %v618 = vunpack.c.l.b16 %v483
    %v619 = vunpack.c.l.b16 %v484
    %v620 = vunpack.c.l.b16 %v485
    %v621 = vunpack.c.l.b16 %v486
    %v622 = vunpack.c.l.b16 %v487
    %v623 = vunpack.c.l.b16 %v488
    %v624 = vunpack.c.l.b16 %v489
    %v625 = vunpack.c.l.b16 %v490
    %v626 = vunpack.c.l.b16 %v491
    %v627 = vunpack.c.l.b16 %v492
    %v628 = vunpack.c.l.b16 %v493
    %v629 = vunpack.c.l.b16 %v494
    %v630 = vunpack.c.l.b16 %v495
    %v631 = vunpack.c.l.b16 %v496
    %v632 = vunpack.c.l.b16 %v497
    %v633 = vunpack.c.l.b16 %v498
    %v634 = vunpack.c.l.b16 %v499
    %v635 = vunpack.c.l.b16 %v500
    %v636 = vunpack.c.l.b16 %v501
    %v637 = vunpack.c.l.b16 %v502
    %v638 = vunpack.c.l.b16 %v503
    %v639 = vunpack.c.l.b16 %v504
    %v640 = vunpack.c.l.b16 %v505
    %v641 = vunpack.c.l.b16 %v506
    %v642 = vunpack.c.l.b16 %v507
    %v643 = vunpack.c.l.b16 %v508
    %v644 = vunpack.c.l.b16 %v509
    %v645 = vunpack.c.l.b16 %v510
    %v646 = vunpack.c.l.b16 %v511
    %v647 = vunpack.c.l.b16 %v512
    %v648 = vunpack.c.l.b16 %v513
    %v649 = vunpack.c.l.b16 %v514
    %v650 = vunpack.c.l.b16 %v515
    %v651 = vunpack.c.l.b16 %v516
    %v652 = vunpack.c.l.b16 %v517
    %v653 = vunpack.c.l.b16 %v518
    %v654 = vunpack.c.l.b16 %v519
    %v655 = vunpack.c.l.b16 %v520
    %v656 = vunpack.c.l.b16 %v521
    %v657 = vunpack.c.l.b16 %v522
    %v658 = vunpack.c.l.b16 %v523
    %v659 = vunpack.c.l.b16 %v524
    %v660 = vunpack.c.l.b16 %v525
    %v661 = vunpack.c.l.b16 %v526
    %v662 = vunpack.c.l.b16 %v527
    %v663 = vunpack.c.l.b16 %v528
    %v664 = vunpack.c.l.b16 %v529
    %v665 = vunpack.c.l.b16 %v530
    %v666 = vpack.c.b16 %v603, %v602
    %v667 = vpack.c.b16 %v605, %v604
    %v668 = vpack.c.b16 %v607, %v606
    %v669 = vpack.c.b16 %v609, %v608
    %v670 = vpack.c.b16 %v611, %v610
    %v671 = vpack.c.b16 %v613, %v612
    %v672 = vpack.c.b16 %v615, %v614
    %v673 = vpack.c.b16 %v617, %v616
    %v674 = vpack.c.b16 %v619, %v618
    %v675 = vpack.c.b16 %v621, %v620
    %v676 = vpack.c.b16 %v623, %v622
    %v677 = vpack.c.b16 %v625, %v624
    %v678 = vpack.c.b16 %v627, %v626
    %v679 = vpack.c.b16 %v629, %v628
    %v680 = vpack.c.b16 %v631, %v630
    %v681 = vpack.c.b16 %v633, %v632
    %v682 = vpack.c.b16 %v635, %v634
    %v683 = vpack.c.b16 %v637, %v636
    %v684 = vpack.c.b16 %v639, %v638
    %v685 = vpack.c.b16 %v641, %v640
    %v686 = vpack.c.b16 %v643, %v642
    %v687 = vpack.c.b16 %v645, %v644
    %v688 = vpack.c.b16 %v647, %v646
    %v689 = vpack.c.b16 %v649, %v648
    %v690 = vpack.c.b16 %v651, %v650
    %v691 = vpack.c.b16 %v653, %v652
    %v692 = vpack.c.b16 %v655, %v654
    %v693 = vpack.c.b16 %v657, %v656
    %v694 = vpack.c.b16 %v659, %v658
    %v695 = vpack.c.b16 %v661, %v660
    %v696 = vpack.c.b16 %v663, %v662
    %v697 = vpack.c.b16 %v665, %v664
    %730 = vmatprep.subr.bf16.mxu0 0
    %731 = vmatpush1.bf16.msra.mxu0 %v666
    %732 = vmatprep.subr.bf16.mxu0 0
    %733 = vmatpush1.bf16.msra.mxu0 %v667
    %734 = vmatprep.subr.bf16.mxu0 0
    %735 = vmatpush1.bf16.msra.mxu0 %v668
    %736 = vmatprep.subr.bf16.mxu0 0
    %737 = vmatpush1.bf16.msra.mxu0 %v669
    %738 = vmatprep.subr.bf16.mxu0 0
    %739 = vmatpush1.bf16.msra.mxu0 %v670
    %740 = vmatprep.subr.bf16.mxu0 0
    %741 = vmatpush1.bf16.msra.mxu0 %v671
    %742 = vmatprep.subr.bf16.mxu0 0
    %743 = vmatpush1.bf16.msra.mxu0 %v672
    %744 = vmatprep.subr.bf16.mxu0 0
    %745 = vmatpush1.bf16.msra.mxu0 %v673
    %746 = vmatprep.subr.bf16.mxu0 0
    %747 = vmatpush1.bf16.msra.mxu0 %v674
    %748 = vmatprep.subr.bf16.mxu0 0
    %749 = vmatpush1.bf16.msra.mxu0 %v675
    %750 = vmatprep.subr.bf16.mxu0 0
    %751 = vmatpush1.bf16.msra.mxu0 %v676
    %752 = vmatprep.subr.bf16.mxu0 0
    %753 = vmatpush1.bf16.msra.mxu0 %v677
    %754 = vmatprep.subr.bf16.mxu0 0
    %755 = vmatpush1.bf16.msra.mxu0 %v678
    %756 = vmatprep.subr.bf16.mxu0 0
    %757 = vmatpush1.bf16.msra.mxu0 %v679
    %758 = vmatprep.subr.bf16.mxu0 0
    %759 = vmatpush1.bf16.msra.mxu0 %v680
    %760 = vmatprep.subr.bf16.mxu0 0
    %761 = vmatpush1.bf16.msra.mxu0 %v681
    %762 = vmatprep.mubr.bf16.mxu0 %v464
    %763 = vmatmul.mubr.bf16.gmra.mrb[0].mxu0 %v463
    %v764 = vpop.f32.mrb[0].mxu0
    %v765 = vadd.f32 %v536, %v764
    %v766 = vpop.f32.mrb[0].mxu0
    %v767 = vpop.f32.mrb[0].mxu0
    %v768 = vadd.f32 %v536, %v767
    %v769 = vpop.f32.mrb[0].mxu0
    %770 = vdwg.mxu0
    %771 = vmatprep.subr.bf16.mxu0 0
    %772 = vmatpush1.bf16.msra.mxu0 %v682
    %773 = vmatprep.subr.bf16.mxu0 0
    %774 = vmatpush1.bf16.msra.mxu0 %v683
    %775 = vmatprep.subr.bf16.mxu0 0
    %776 = vmatpush1.bf16.msra.mxu0 %v684
    %777 = vmatprep.subr.bf16.mxu0 0
    %778 = vmatpush1.bf16.msra.mxu0 %v685
    %779 = vmatprep.subr.bf16.mxu0 0
    %780 = vmatpush1.bf16.msra.mxu0 %v686
    %781 = vmatprep.subr.bf16.mxu0 0
    %782 = vmatpush1.bf16.msra.mxu0 %v687
    %783 = vmatprep.subr.bf16.mxu0 0
    %784 = vmatpush1.bf16.msra.mxu0 %v688
    %785 = vmatprep.subr.bf16.mxu0 0
    %786 = vmatpush1.bf16.msra.mxu0 %v689
    %787 = vmatprep.subr.bf16.mxu0 0
    %788 = vmatpush1.bf16.msra.mxu0 %v690
    %789 = vmatprep.subr.bf16.mxu0 0
    %790 = vmatpush1.bf16.msra.mxu0 %v691
    %791 = vmatprep.subr.bf16.mxu0 0
    %792 = vmatpush1.bf16.msra.mxu0 %v692
    %793 = vmatprep.subr.bf16.mxu0 0
    %794 = vmatpush1.bf16.msra.mxu0 %v693
    %795 = vmatprep.subr.bf16.mxu0 0
    %796 = vmatpush1.bf16.msra.mxu0 %v694
    %797 = vmatprep.subr.bf16.mxu0 0
    %798 = vmatpush1.bf16.msra.mxu0 %v695
    %799 = vmatprep.subr.bf16.mxu0 0
    %800 = vmatpush1.bf16.msra.mxu0 %v696
    %801 = vmatprep.subr.bf16.mxu0 0
    %802 = vmatpush1.bf16.msra.mxu0 %v697
    %803 = vmatprep.mubr.bf16.mxu0 %v466
    %804 = vmatmul.mubr.bf16.gmra.mrb[0].mxu0 %v465
    %v805 = vpop.f32.mrb[0].mxu0
    %v806 = vadd.f32 %v765, %v805
    %v807 = vpop.f32.mrb[0].mxu0
    %v808 = vpop.f32.mrb[0].mxu0
    %v809 = vadd.f32 %v768, %v808
    %v810 = vpop.f32.mrb[0].mxu0
    %811 = vdwg.mxu0
    %v812 = vmul.f32 %v77, 0.5
    %v813 = vmul.f32 %v78, 0.5
    %v814 = vadd.f32 %v806, %v812
    %v815 = vadd.f32 %v809, %v813
    %816 = vadd.xlane.f32.xlu0 %v814
    %v817 = vpop.xlane.xlu0 %816
    %818 = vadd.xlane.f32.xlu0 %v815
    %v819 = vpop.xlane.xlu0 %818
    %v820 = vmul.f32 %v817, %v83
    %v821 = vmul.f32 %v819, %v83
    %v822 = vmul.f32 %v814, %v814
    %v823 = vmul.f32 %v815, %v815
    %824 = vadd.xlane.f32.xlu0 %v822
    %v825 = vpop.xlane.xlu0 %824
    %826 = vadd.xlane.f32.xlu0 %v823
    %v827 = vpop.xlane.xlu0 %826
    %v828 = vmul.f32 %v825, %v83
    %v829 = vmul.f32 %v827, %v83
    %v830 = vsub.f32 %v814, %v820
    %v831 = vsub.f32 %v815, %v821
    %v832 = vmul.f32 %v820, %v820
    %v833 = vmul.f32 %v821, %v821
    %v834 = vsub.f32 %v828, %v832
    %v835 = vsub.f32 %v829, %v833
    %v836 = vadd.f32 %v834, 1e-05
    %v837 = vadd.f32 %v835, 1e-05
    %v838 = vrsqrt.pop %v836
    %v839 = vrsqrt.pop %v837
    %v840 = vmul.f32 %v830, %v838
    %v841 = vmul.f32 %v831, %v839
    %v842 = vpack.c.bf16 %v841, %v840
    %s843 = scalar_lea.vmem [#allocation5], 256
    %v844 = vld [vmem:[%s843] sm:$0xff]
    %v845 = vld [vmem:[%s843 + $0x8] sm:$0xff]
    %v846 = vld [vmem:[%s843 + $0x10] sm:$0xff]
    %v847 = vld [vmem:[%s843 + $0x18] sm:$0xff]
    %v848 = vld [vmem:[%s843 + $0x20] sm:$0xff]
    %v849 = vld [vmem:[%s843 + $0x28] sm:$0xff]
    %v850 = vld [vmem:[%s843 + $0x30] sm:$0xff]
    %v851 = vld [vmem:[%s843 + $0x38] sm:$0xff]
    %v852 = vld [vmem:[%s843 + $0x40] sm:$0xff]
    %v853 = vld [vmem:[%s843 + $0x48] sm:$0xff]
    %v854 = vld [vmem:[%s843 + $0x50] sm:$0xff]
    %v855 = vld [vmem:[%s843 + $0x58] sm:$0xff]
    %v856 = vld [vmem:[%s843 + $0x60] sm:$0xff]
    %v857 = vld [vmem:[%s843 + $0x68] sm:$0xff]
    %v858 = vld [vmem:[%s843 + $0x70] sm:$0xff]
    %v859 = vld [vmem:[%s843 + $0x78] sm:$0xff]
    %v860 = vld [vmem:[%s843 + $0x80] sm:$0xff]
    %v861 = vld [vmem:[%s843 + $0x88] sm:$0xff]
    %v862 = vld [vmem:[%s843 + $0x90] sm:$0xff]
    %v863 = vld [vmem:[%s843 + $0x98] sm:$0xff]
    %v864 = vld [vmem:[%s843 + $0xa0] sm:$0xff]
    %v865 = vld [vmem:[%s843 + $0xa8] sm:$0xff]
    %v866 = vld [vmem:[%s843 + $0xb0] sm:$0xff]
    %v867 = vld [vmem:[%s843 + $0xb8] sm:$0xff]
    %v868 = vld [vmem:[%s843 + $0xc0] sm:$0xff]
    %v869 = vld [vmem:[%s843 + $0xc8] sm:$0xff]
    %v870 = vld [vmem:[%s843 + $0xd0] sm:$0xff]
    %v871 = vld [vmem:[%s843 + $0xd8] sm:$0xff]
    %v872 = vld [vmem:[%s843 + $0xe0] sm:$0xff]
    %v873 = vld [vmem:[%s843 + $0xe8] sm:$0xff]
    %v874 = vld [vmem:[%s843 + $0xf0] sm:$0xff]
    %v875 = vld [vmem:[%s843 + $0xf8] sm:$0xff]
    %s876 = scalar_lea.vmem [#allocation7], 4
    %v877 = vld [vmem:[%s876] sm:$0xf]
    %v879 = vlaneseq
    %v880 = vshrl.u32 %v879, 7
    %v881 = vsub.s32 0, %v880
    %v882 = vrot.slane %v877, %v881
    %v883 = vlaneseq
    %v884 = vshrl.u32 %v883, 7
    %v885 = vsub.s32 1, %v884
    %v886 = vrot.slane %v877, %v885
    %v887 = vlaneseq
    %v888 = vshrl.u32 %v887, 7
    %v889 = vsub.s32 2, %v888
    %v890 = vrot.slane %v877, %v889
    %v891 = vlaneseq
    %v892 = vshrl.u32 %v891, 7
    %v893 = vsub.s32 3, %v892
    %v894 = vrot.slane %v877, %v893
    %v931 = vunpack.c.l.b16 %v844
    %v932 = vunpack.c.h.b16 %v844
    %v933 = vunpack.c.l.b16 %v845
    %v934 = vunpack.c.h.b16 %v845
    %v935 = vunpack.c.l.b16 %v846
    %v936 = vunpack.c.h.b16 %v846
    %v937 = vunpack.c.l.b16 %v847
    %v938 = vunpack.c.h.b16 %v847
    %v939 = vunpack.c.l.b16 %v848
    %v940 = vunpack.c.h.b16 %v848
    %v941 = vunpack.c.l.b16 %v849
    %v942 = vunpack.c.h.b16 %v849
    %v943 = vunpack.c.l.b16 %v850
    %v944 = vunpack.c.h.b16 %v850
    %v945 = vunpack.c.l.b16 %v851
    %v946 = vunpack.c.h.b16 %v851
    %v947 = vunpack.c.l.b16 %v852
    %v948 = vunpack.c.h.b16 %v852
    %v949 = vunpack.c.l.b16 %v853
    %v950 = vunpack.c.h.b16 %v853
    %v951 = vunpack.c.l.b16 %v854
    %v952 = vunpack.c.h.b16 %v854
    %v953 = vunpack.c.l.b16 %v855
    %v954 = vunpack.c.h.b16 %v855
    %v955 = vunpack.c.l.b16 %v856
    %v956 = vunpack.c.h.b16 %v856
    %v957 = vunpack.c.l.b16 %v857
    %v958 = vunpack.c.h.b16 %v857
    %v959 = vunpack.c.l.b16 %v858
    %v960 = vunpack.c.h.b16 %v858
    %v961 = vunpack.c.l.b16 %v859
    %v962 = vunpack.c.h.b16 %v859
    %v963 = vunpack.c.l.b16 %v860
    %v964 = vunpack.c.h.b16 %v860
    %v965 = vunpack.c.l.b16 %v861
    %v966 = vunpack.c.h.b16 %v861
    %v967 = vunpack.c.l.b16 %v862
    %v968 = vunpack.c.h.b16 %v862
    %v969 = vunpack.c.l.b16 %v863
    %v970 = vunpack.c.h.b16 %v863
    %v971 = vunpack.c.l.b16 %v864
    %v972 = vunpack.c.h.b16 %v864
    %v973 = vunpack.c.l.b16 %v865
    %v974 = vunpack.c.h.b16 %v865
    %v975 = vunpack.c.l.b16 %v866
    %v976 = vunpack.c.h.b16 %v866
    %v977 = vunpack.c.l.b16 %v867
    %v978 = vunpack.c.h.b16 %v867
    %v979 = vunpack.c.l.b16 %v868
    %v980 = vunpack.c.h.b16 %v868
    %v981 = vunpack.c.l.b16 %v869
    %v982 = vunpack.c.h.b16 %v869
    %v983 = vunpack.c.l.b16 %v870
    %v984 = vunpack.c.h.b16 %v870
    %v985 = vunpack.c.l.b16 %v871
    %v986 = vunpack.c.h.b16 %v871
    %v987 = vunpack.c.l.b16 %v872
    %v988 = vunpack.c.h.b16 %v872
    %v989 = vunpack.c.l.b16 %v873
    %v990 = vunpack.c.h.b16 %v873
    %v991 = vunpack.c.l.b16 %v874
    %v992 = vunpack.c.h.b16 %v874
    %v993 = vunpack.c.l.b16 %v875
    %v994 = vunpack.c.h.b16 %v875
    %v995 = vpack.c.b16 %v935, %v931
    %v996 = vpack.c.b16 %v936, %v932
    %v997 = vpack.c.b16 %v937, %v933
    %v998 = vpack.c.b16 %v938, %v934
    %v999 = vpack.c.b16 %v943, %v939
    %v1000 = vpack.c.b16 %v944, %v940
    %v1001 = vpack.c.b16 %v945, %v941
    %v1002 = vpack.c.b16 %v946, %v942
    %v1003 = vpack.c.b16 %v951, %v947
    %v1004 = vpack.c.b16 %v952, %v948
    %v1005 = vpack.c.b16 %v953, %v949
    %v1006 = vpack.c.b16 %v954, %v950
    %v1007 = vpack.c.b16 %v959, %v955
    %v1008 = vpack.c.b16 %v960, %v956
    %v1009 = vpack.c.b16 %v961, %v957
    %v1010 = vpack.c.b16 %v962, %v958
    %v1011 = vpack.c.b16 %v967, %v963
    %v1012 = vpack.c.b16 %v968, %v964
    %v1013 = vpack.c.b16 %v969, %v965
    %v1014 = vpack.c.b16 %v970, %v966
    %v1015 = vpack.c.b16 %v975, %v971
    %v1016 = vpack.c.b16 %v976, %v972
    %v1017 = vpack.c.b16 %v977, %v973
    %v1018 = vpack.c.b16 %v978, %v974
    %v1019 = vpack.c.b16 %v983, %v979
    %v1020 = vpack.c.b16 %v984, %v980
    %v1021 = vpack.c.b16 %v985, %v981
    %v1022 = vpack.c.b16 %v986, %v982
    %v1023 = vpack.c.b16 %v991, %v987
    %v1024 = vpack.c.b16 %v992, %v988
    %v1025 = vpack.c.b16 %v993, %v989
    %v1026 = vpack.c.b16 %v994, %v990
    %1059 = vmatprep.subr.bf16.mxu0 %v996
    %1060 = vmatpush1.bf16.msra.mxu0 %v995
    %1061 = vmatprep.subr.bf16.mxu0 %v1000
    %1062 = vmatpush1.bf16.msra.mxu0 %v999
    %1063 = vmatprep.subr.bf16.mxu0 %v1004
    %1064 = vmatpush1.bf16.msra.mxu0 %v1003
    %1065 = vmatprep.subr.bf16.mxu0 %v1008
    %1066 = vmatpush1.bf16.msra.mxu0 %v1007
    %1067 = vmatprep.subr.bf16.mxu0 %v1012
    %1068 = vmatpush1.bf16.msra.mxu0 %v1011
    %1069 = vmatprep.subr.bf16.mxu0 %v1016
    %1070 = vmatpush1.bf16.msra.mxu0 %v1015
    %1071 = vmatprep.subr.bf16.mxu0 %v1020
    %1072 = vmatpush1.bf16.msra.mxu0 %v1019
    %1073 = vmatprep.subr.bf16.mxu0 %v1024
    %1074 = vmatpush1.bf16.msra.mxu0 %v1023
    %1075 = vmatprep.subr.bf16.mxu0 0
    %1076 = vmatpush1.bf16.msra.mxu0 0
    %1077 = vmatprep.subr.bf16.mxu0 0
    %1078 = vmatpush1.bf16.msra.mxu0 0
    %1079 = vmatprep.subr.bf16.mxu0 0
    %1080 = vmatpush1.bf16.msra.mxu0 0
    %1081 = vmatprep.subr.bf16.mxu0 0
    %1082 = vmatpush1.bf16.msra.mxu0 0
    %1083 = vmatprep.subr.bf16.mxu0 0
    %1084 = vmatpush1.bf16.msra.mxu0 0
    %1085 = vmatprep.subr.bf16.mxu0 0
    %1086 = vmatpush1.bf16.msra.mxu0 0
    %1087 = vmatprep.subr.bf16.mxu0 0
    %1088 = vmatpush1.bf16.msra.mxu0 0
    %1089 = vmatprep.subr.bf16.mxu0 0
    %1090 = vmatpush1.bf16.msra.mxu0 0
    %1091 = vmatprep.mubr.bf16.mxu0 0
    %1092 = vmatmul.mubr.bf16.gmra.mrb[0].mxu0 %v842
    %v1093 = vpop.f32.mrb[0].mxu0
    %v1094 = vadd.f32 %v882, %v1093
    %v1095 = vpop.f32.mrb[0].mxu0
    %v1096 = vadd.f32 %v886, %v1095
    %v1097 = vpop.f32.mrb[0].mxu0
    %v1098 = vadd.f32 %v882, %v1097
    %v1099 = vpop.f32.mrb[0].mxu0
    %v1100 = vadd.f32 %v886, %v1099
    %1101 = vdwg.mxu0
    %1102 = vmatprep.subr.bf16.mxu0 %v998
    %1103 = vmatpush1.bf16.msra.mxu0 %v997
    %1104 = vmatprep.subr.bf16.mxu0 %v1002
    %1105 = vmatpush1.bf16.msra.mxu0 %v1001
    %1106 = vmatprep.subr.bf16.mxu0 %v1006
    %1107 = vmatpush1.bf16.msra.mxu0 %v1005
    %1108 = vmatprep.subr.bf16.mxu0 %v1010
    %1109 = vmatpush1.bf16.msra.mxu0 %v1009
    %1110 = vmatprep.subr.bf16.mxu0 %v1014
    %1111 = vmatpush1.bf16.msra.mxu0 %v1013
    %1112 = vmatprep.subr.bf16.mxu0 %v1018
    %1113 = vmatpush1.bf16.msra.mxu0 %v1017
    %1114 = vmatprep.subr.bf16.mxu0 %v1022
    %1115 = vmatpush1.bf16.msra.mxu0 %v1021
    %1116 = vmatprep.subr.bf16.mxu0 %v1026
    %1117 = vmatpush1.bf16.msra.mxu0 %v1025
    %1118 = vmatprep.subr.bf16.mxu0 0
    %1119 = vmatpush1.bf16.msra.mxu0 0
    %1120 = vmatprep.subr.bf16.mxu0 0
    %1121 = vmatpush1.bf16.msra.mxu0 0
    %1122 = vmatprep.subr.bf16.mxu0 0
    %1123 = vmatpush1.bf16.msra.mxu0 0
    %1124 = vmatprep.subr.bf16.mxu0 0
    %1125 = vmatpush1.bf16.msra.mxu0 0
    %1126 = vmatprep.subr.bf16.mxu0 0
    %1127 = vmatpush1.bf16.msra.mxu0 0
    %1128 = vmatprep.subr.bf16.mxu0 0
    %1129 = vmatpush1.bf16.msra.mxu0 0
    %1130 = vmatprep.subr.bf16.mxu0 0
    %1131 = vmatpush1.bf16.msra.mxu0 0
    %1132 = vmatprep.subr.bf16.mxu0 0
    %1133 = vmatpush1.bf16.msra.mxu0 0
    %1134 = vmatprep.mubr.bf16.mxu0 0
    %1135 = vmatmul.mubr.bf16.gmra.mrb[0].mxu0 %v842
    %v1136 = vpop.f32.mrb[0].mxu0
    %v1137 = vadd.f32 %v890, %v1136
    %v1138 = vpop.f32.mrb[0].mxu0
    %v1139 = vadd.f32 %v894, %v1138
    %v1140 = vpop.f32.mrb[0].mxu0
    %v1141 = vadd.f32 %v890, %v1140
    %v1142 = vpop.f32.mrb[0].mxu0
    %v1143 = vadd.f32 %v894, %v1142
    %1144 = vdwg.mxu0
    %v1145 = vxor.u32 %v1094, 2147483648
    %v1146 = vxor.u32 %v1096, 2147483648
    %v1147 = vxor.u32 %v1137, 2147483648
    %v1148 = vxor.u32 %v1139, 2147483648
    %v1149 = vxor.u32 %v1098, 2147483648
    %v1150 = vxor.u32 %v1100, 2147483648
    %v1151 = vxor.u32 %v1141, 2147483648
    %v1152 = vxor.u32 %v1143, 2147483648
    %v1153 = vmul.f32 %v1145, 1.442695
    %v1154 = vpow.pop %v1153
    %v1155 = vmul.f32 %v1146, 1.442695
    %v1156 = vpow.pop %v1155
    %v1157 = vmul.f32 %v1147, 1.442695
    %v1158 = vpow.pop %v1157
    %v1159 = vmul.f32 %v1148, 1.442695
    %v1160 = vpow.pop %v1159
    %v1161 = vmul.f32 %v1149, 1.442695
    %v1162 = vpow.pop %v1161
    %v1163 = vmul.f32 %v1150, 1.442695
    %v1164 = vpow.pop %v1163
    %v1165 = vmul.f32 %v1151, 1.442695
    %v1166 = vpow.pop %v1165
    %v1167 = vmul.f32 %v1152, 1.442695
    %v1168 = vpow.pop %v1167
    %v1169 = vadd.f32 %v1154, 1.0
    %v1170 = vadd.f32 %v1156, 1.0
    %v1171 = vadd.f32 %v1158, 1.0
    %v1172 = vadd.f32 %v1160, 1.0
    %v1173 = vadd.f32 %v1162, 1.0
    %v1174 = vadd.f32 %v1164, 1.0
    %v1175 = vadd.f32 %v1166, 1.0
    %v1176 = vadd.f32 %v1168, 1.0
    %v1177 = vrcp.pop %v1169
    %v1178 = vmul.f32 1.0, %v1177
    %v1179 = vrcp.pop %v1170
    %v1180 = vmul.f32 1.0, %v1179
    %v1181 = vrcp.pop %v1171
    %v1182 = vmul.f32 1.0, %v1181
    %v1183 = vrcp.pop %v1172
    %v1184 = vmul.f32 1.0, %v1183
    %v1185 = vrcp.pop %v1173
    %v1186 = vmul.f32 1.0, %v1185
    %v1187 = vrcp.pop %v1174
    %v1188 = vmul.f32 1.0, %v1187
    %v1189 = vrcp.pop %v1175
    %v1190 = vmul.f32 1.0, %v1189
    %v1191 = vrcp.pop %v1176
    %v1192 = vmul.f32 1.0, %v1191
    %v1193 = vmul.f32 %v1094, %v1178
    %v1194 = vmul.f32 %v1096, %v1180
    %v1195 = vmul.f32 %v1137, %v1182
    %v1196 = vmul.f32 %v1139, %v1184
    %v1197 = vmul.f32 %v1098, %v1186
    %v1198 = vmul.f32 %v1100, %v1188
    %v1199 = vmul.f32 %v1141, %v1190
    %v1200 = vmul.f32 %v1143, %v1192
    %v1201 = vpack.c.bf16 %v1197, %v1193
    %v1202 = vpack.c.bf16 %v1198, %v1194
    %v1203 = vpack.c.bf16 %v1199, %v1195
    %v1204 = vpack.c.bf16 %v1200, %v1196
    %s1205 = scalar_lea.vmem [#allocation8], 256
    %v1206 = vld [vmem:[%s1205] sm:$0xf]
    %v1207 = vld [vmem:[%s1205 + $0x4] sm:$0xf]
    %v1208 = vld [vmem:[%s1205 + $0x8] sm:$0xf]
    %v1209 = vld [vmem:[%s1205 + $0xc] sm:$0xf]
    %v1210 = vld [vmem:[%s1205 + $0x10] sm:$0xf]
    %v1211 = vld [vmem:[%s1205 + $0x14] sm:$0xf]
    %v1212 = vld [vmem:[%s1205 + $0x18] sm:$0xf]
    %v1213 = vld [vmem:[%s1205 + $0x1c] sm:$0xf]
    %v1214 = vld [vmem:[%s1205 + $0x20] sm:$0xf]
    %v1215 = vld [vmem:[%s1205 + $0x24] sm:$0xf]
    %v1216 = vld [vmem:[%s1205 + $0x28] sm:$0xf]
    %v1217 = vld [vmem:[%s1205 + $0x2c] sm:$0xf]
    %v1218 = vld [vmem:[%s1205 + $0x30] sm:$0xf]
    %v1219 = vld [vmem:[%s1205 + $0x34] sm:$0xf]
    %v1220 = vld [vmem:[%s1205 + $0x38] sm:$0xf]
    %v1221 = vld [vmem:[%s1205 + $0x3c] sm:$0xf]
    %v1222 = vld [vmem:[%s1205 + $0x40] sm:$0xf]
    %v1223 = vld [vmem:[%s1205 + $0x44] sm:$0xf]
    %v1224 = vld [vmem:[%s1205 + $0x48] sm:$0xf]
    %v1225 = vld [vmem:[%s1205 + $0x4c] sm:$0xf]
    %v1226 = vld [vmem:[%s1205 + $0x50] sm:$0xf]
    %v1227 = vld [vmem:[%s1205 + $0x54] sm:$0xf]
    %v1228 = vld [vmem:[%s1205 + $0x58] sm:$0xf]
    %v1229 = vld [vmem:[%s1205 + $0x5c] sm:$0xf]
    %v1230 = vld [vmem:[%s1205 + $0x60] sm:$0xf]
    %v1231 = vld [vmem:[%s1205 + $0x64] sm:$0xf]
    %v1232 = vld [vmem:[%s1205 + $0x68] sm:$0xf]
    %v1233 = vld [vmem:[%s1205 + $0x6c] sm:$0xf]
    %v1234 = vld [vmem:[%s1205 + $0x70] sm:$0xf]
    %v1235 = vld [vmem:[%s1205 + $0x74] sm:$0xf]
    %v1236 = vld [vmem:[%s1205 + $0x78] sm:$0xf]
    %v1237 = vld [vmem:[%s1205 + $0x7c] sm:$0xf]
    %v1238 = vld [vmem:[%s1205 + $0x80] sm:$0xf]
    %v1239 = vld [vmem:[%s1205 + $0x84] sm:$0xf]
    %v1240 = vld [vmem:[%s1205 + $0x88] sm:$0xf]
    %v1241 = vld [vmem:[%s1205 + $0x8c] sm:$0xf]
    %v1242 = vld [vmem:[%s1205 + $0x90] sm:$0xf]
    %v1243 = vld [vmem:[%s1205 + $0x94] sm:$0xf]
    %v1244 = vld [vmem:[%s1205 + $0x98] sm:$0xf]
    %v1245 = vld [vmem:[%s1205 + $0x9c] sm:$0xf]
    %v1246 = vld [vmem:[%s1205 + $0xa0] sm:$0xf]
    %v1247 = vld [vmem:[%s1205 + $0xa4] sm:$0xf]
    %v1248 = vld [vmem:[%s1205 + $0xa8] sm:$0xf]
    %v1249 = vld [vmem:[%s1205 + $0xac] sm:$0xf]
    %v1250 = vld [vmem:[%s1205 + $0xb0] sm:$0xf]
    %v1251 = vld [vmem:[%s1205 + $0xb4] sm:$0xf]
    %v1252 = vld [vmem:[%s1205 + $0xb8] sm:$0xf]
    %v1253 = vld [vmem:[%s1205 + $0xbc] sm:$0xf]
    %v1254 = vld [vmem:[%s1205 + $0xc0] sm:$0xf]
    %v1255 = vld [vmem:[%s1205 + $0xc4] sm:$0xf]
    %v1256 = vld [vmem:[%s1205 + $0xc8] sm:$0xf]
    %v1257 = vld [vmem:[%s1205 + $0xcc] sm:$0xf]
    %v1258 = vld [vmem:[%s1205 + $0xd0] sm:$0xf]
    %v1259 = vld [vmem:[%s1205 + $0xd4] sm:$0xf]
    %v1260 = vld [vmem:[%s1205 + $0xd8] sm:$0xf]
    %v1261 = vld [vmem:[%s1205 + $0xdc] sm:$0xf]
    %v1262 = vld [vmem:[%s1205 + $0xe0] sm:$0xf]
    %v1263 = vld [vmem:[%s1205 + $0xe4] sm:$0xf]
    %v1264 = vld [vmem:[%s1205 + $0xe8] sm:$0xf]
    %v1265 = vld [vmem:[%s1205 + $0xec] sm:$0xf]
    %v1266 = vld [vmem:[%s1205 + $0xf0] sm:$0xf]
    %v1267 = vld [vmem:[%s1205 + $0xf4] sm:$0xf]
    %v1268 = vld [vmem:[%s1205 + $0xf8] sm:$0xf]
    %v1269 = vld [vmem:[%s1205 + $0xfc] sm:$0xf]
    %s1270 = scalar_lea.vmem %s4, 1
    %v1271 = vld [vmem:[%s1270] sm:$0x1]
    %v1273 = vlaneseq
    %v1274 = vshrl.u32 %v1273, 7
    %v1275 = vsub.s32 0, %v1274
    %v1276 = vrot.slane %v1271, %v1275
    %v1342 = vunpack.c.l.b16 %v1206
    %v1343 = vunpack.c.l.b16 %v1207
    %v1344 = vunpack.c.l.b16 %v1208
    %v1345 = vunpack.c.l.b16 %v1209
    %v1346 = vunpack.c.l.b16 %v1210
    %v1347 = vunpack.c.l.b16 %v1211
    %v1348 = vunpack.c.l.b16 %v1212
    %v1349 = vunpack.c.l.b16 %v1213
    %v1350 = vunpack.c.l.b16 %v1214
    %v1351 = vunpack.c.l.b16 %v1215
    %v1352 = vunpack.c.l.b16 %v1216
    %v1353 = vunpack.c.l.b16 %v1217
    %v1354 = vunpack.c.l.b16 %v1218
    %v1355 = vunpack.c.l.b16 %v1219
    %v1356 = vunpack.c.l.b16 %v1220
    %v1357 = vunpack.c.l.b16 %v1221
    %v1358 = vunpack.c.l.b16 %v1222
    %v1359 = vunpack.c.l.b16 %v1223
    %v1360 = vunpack.c.l.b16 %v1224
    %v1361 = vunpack.c.l.b16 %v1225
    %v1362 = vunpack.c.l.b16 %v1226
    %v1363 = vunpack.c.l.b16 %v1227
    %v1364 = vunpack.c.l.b16 %v1228
    %v1365 = vunpack.c.l.b16 %v1229
    %v1366 = vunpack.c.l.b16 %v1230
    %v1367 = vunpack.c.l.b16 %v1231
    %v1368 = vunpack.c.l.b16 %v1232
    %v1369 = vunpack.c.l.b16 %v1233
    %v1370 = vunpack.c.l.b16 %v1234
    %v1371 = vunpack.c.l.b16 %v1235
    %v1372 = vunpack.c.l.b16 %v1236
    %v1373 = vunpack.c.l.b16 %v1237
    %v1374 = vunpack.c.l.b16 %v1238
    %v1375 = vunpack.c.l.b16 %v1239
    %v1376 = vunpack.c.l.b16 %v1240
    %v1377 = vunpack.c.l.b16 %v1241
    %v1378 = vunpack.c.l.b16 %v1242
    %v1379 = vunpack.c.l.b16 %v1243
    %v1380 = vunpack.c.l.b16 %v1244
    %v1381 = vunpack.c.l.b16 %v1245
    %v1382 = vunpack.c.l.b16 %v1246
    %v1383 = vunpack.c.l.b16 %v1247
    %v1384 = vunpack.c.l.b16 %v1248
    %v1385 = vunpack.c.l.b16 %v1249
    %v1386 = vunpack.c.l.b16 %v1250
    %v1387 = vunpack.c.l.b16 %v1251
    %v1388 = vunpack.c.l.b16 %v1252
    %v1389 = vunpack.c.l.b16 %v1253
    %v1390 = vunpack.c.l.b16 %v1254
    %v1391 = vunpack.c.l.b16 %v1255
    %v1392 = vunpack.c.l.b16 %v1256
    %v1393 = vunpack.c.l.b16 %v1257
    %v1394 = vunpack.c.l.b16 %v1258
    %v1395 = vunpack.c.l.b16 %v1259
    %v1396 = vunpack.c.l.b16 %v1260
    %v1397 = vunpack.c.l.b16 %v1261
    %v1398 = vunpack.c.l.b16 %v1262
    %v1399 = vunpack.c.l.b16 %v1263
    %v1400 = vunpack.c.l.b16 %v1264
    %v1401 = vunpack.c.l.b16 %v1265
    %v1402 = vunpack.c.l.b16 %v1266
    %v1403 = vunpack.c.l.b16 %v1267
    %v1404 = vunpack.c.l.b16 %v1268
    %v1405 = vunpack.c.l.b16 %v1269
    %v1406 = vpack.c.b16 %v1343, %v1342
    %v1407 = vpack.c.b16 %v1345, %v1344
    %v1408 = vpack.c.b16 %v1347, %v1346
    %v1409 = vpack.c.b16 %v1349, %v1348
    %v1410 = vpack.c.b16 %v1351, %v1350
    %v1411 = vpack.c.b16 %v1353, %v1352
    %v1412 = vpack.c.b16 %v1355, %v1354
    %v1413 = vpack.c.b16 %v1357, %v1356
    %v1414 = vpack.c.b16 %v1359, %v1358
    %v1415 = vpack.c.b16 %v1361, %v1360
    %v1416 = vpack.c.b16 %v1363, %v1362
    %v1417 = vpack.c.b16 %v1365, %v1364
    %v1418 = vpack.c.b16 %v1367, %v1366
    %v1419 = vpack.c.b16 %v1369, %v1368
    %v1420 = vpack.c.b16 %v1371, %v1370
    %v1421 = vpack.c.b16 %v1373, %v1372
    %v1422 = vpack.c.b16 %v1375, %v1374
    %v1423 = vpack.c.b16 %v1377, %v1376
    %v1424 = vpack.c.b16 %v1379, %v1378
    %v1425 = vpack.c.b16 %v1381, %v1380
    %v1426 = vpack.c.b16 %v1383, %v1382
    %v1427 = vpack.c.b16 %v1385, %v1384
    %v1428 = vpack.c.b16 %v1387, %v1386
    %v1429 = vpack.c.b16 %v1389, %v1388
    %v1430 = vpack.c.b16 %v1391, %v1390
    %v1431 = vpack.c.b16 %v1393, %v1392
    %v1432 = vpack.c.b16 %v1395, %v1394
    %v1433 = vpack.c.b16 %v1397, %v1396
    %v1434 = vpack.c.b16 %v1399, %v1398
    %v1435 = vpack.c.b16 %v1401, %v1400
    %v1436 = vpack.c.b16 %v1403, %v1402
    %v1437 = vpack.c.b16 %v1405, %v1404
    %1470 = vmatprep.subr.bf16.mxu0 0
    %1471 = vmatpush1.bf16.msra.mxu0 %v1406
    %1472 = vmatprep.subr.bf16.mxu0 0
    %1473 = vmatpush1.bf16.msra.mxu0 %v1407
    %1474 = vmatprep.subr.bf16.mxu0 0
    %1475 = vmatpush1.bf16.msra.mxu0 %v1408
    %1476 = vmatprep.subr.bf16.mxu0 0
    %1477 = vmatpush1.bf16.msra.mxu0 %v1409
    %1478 = vmatprep.subr.bf16.mxu0 0
    %1479 = vmatpush1.bf16.msra.mxu0 %v1410
    %1480 = vmatprep.subr.bf16.mxu0 0
    %1481 = vmatpush1.bf16.msra.mxu0 %v1411
    %1482 = vmatprep.subr.bf16.mxu0 0
    %1483 = vmatpush1.bf16.msra.mxu0 %v1412
    %1484 = vmatprep.subr.bf16.mxu0 0
    %1485 = vmatpush1.bf16.msra.mxu0 %v1413
    %1486 = vmatprep.subr.bf16.mxu0 0
    %1487 = vmatpush1.bf16.msra.mxu0 %v1414
    %1488 = vmatprep.subr.bf16.mxu0 0
    %1489 = vmatpush1.bf16.msra.mxu0 %v1415
    %1490 = vmatprep.subr.bf16.mxu0 0
    %1491 = vmatpush1.bf16.msra.mxu0 %v1416
    %1492 = vmatprep.subr.bf16.mxu0 0
    %1493 = vmatpush1.bf16.msra.mxu0 %v1417
    %1494 = vmatprep.subr.bf16.mxu0 0
    %1495 = vmatpush1.bf16.msra.mxu0 %v1418
    %1496 = vmatprep.subr.bf16.mxu0 0
    %1497 = vmatpush1.bf16.msra.mxu0 %v1419
    %1498 = vmatprep.subr.bf16.mxu0 0
    %1499 = vmatpush1.bf16.msra.mxu0 %v1420
    %1500 = vmatprep.subr.bf16.mxu0 0
    %1501 = vmatpush1.bf16.msra.mxu0 %v1421
    %1502 = vmatprep.mubr.bf16.mxu0 %v1202
    %1503 = vmatmul.mubr.bf16.gmra.mrb[0].mxu0 %v1201
    %v1504 = vpop.f32.mrb[0].mxu0
    %v1505 = vadd.f32 %v1276, %v1504
    %v1506 = vpop.f32.mrb[0].mxu0
    %v1507 = vpop.f32.mrb[0].mxu0
    %v1508 = vadd.f32 %v1276, %v1507
    %v1509 = vpop.f32.mrb[0].mxu0
    %1510 = vdwg.mxu0
    %1511 = vmatprep.subr.bf16.mxu0 0
    %1512 = vmatpush1.bf16.msra.mxu0 %v1422
    %1513 = vmatprep.subr.bf16.mxu0 0
    %1514 = vmatpush1.bf16.msra.mxu0 %v1423
    %1515 = vmatprep.subr.bf16.mxu0 0
    %1516 = vmatpush1.bf16.msra.mxu0 %v1424
    %1517 = vmatprep.subr.bf16.mxu0 0
    %1518 = vmatpush1.bf16.msra.mxu0 %v1425
    %1519 = vmatprep.subr.bf16.mxu0 0
    %1520 = vmatpush1.bf16.msra.mxu0 %v1426
    %1521 = vmatprep.subr.bf16.mxu0 0
    %1522 = vmatpush1.bf16.msra.mxu0 %v1427
    %1523 = vmatprep.subr.bf16.mxu0 0
    %1524 = vmatpush1.bf16.msra.mxu0 %v1428
    %1525 = vmatprep.subr.bf16.mxu0 0
    %1526 = vmatpush1.bf16.msra.mxu0 %v1429
    %1527 = vmatprep.subr.bf16.mxu0 0
    %1528 = vmatpush1.bf16.msra.mxu0 %v1430
    %1529 = vmatprep.subr.bf16.mxu0 0
    %1530 = vmatpush1.bf16.msra.mxu0 %v1431
    %1531 = vmatprep.subr.bf16.mxu0 0
    %1532 = vmatpush1.bf16.msra.mxu0 %v1432
    %1533 = vmatprep.subr.bf16.mxu0 0
    %1534 = vmatpush1.bf16.msra.mxu0 %v1433
    %1535 = vmatprep.subr.bf16.mxu0 0
    %1536 = vmatpush1.bf16.msra.mxu0 %v1434
    %1537 = vmatprep.subr.bf16.mxu0 0
    %1538 = vmatpush1.bf16.msra.mxu0 %v1435
    %1539 = vmatprep.subr.bf16.mxu0 0
    %1540 = vmatpush1.bf16.msra.mxu0 %v1436
    %1541 = vmatprep.subr.bf16.mxu0 0
    %1542 = vmatpush1.bf16.msra.mxu0 %v1437
    %1543 = vmatprep.mubr.bf16.mxu0 %v1204
    %1544 = vmatmul.mubr.bf16.gmra.mrb[0].mxu0 %v1203
    %v1545 = vpop.f32.mrb[0].mxu0
    %v1546 = vadd.f32 %v1505, %v1545
    %v1547 = vpop.f32.mrb[0].mxu0
    %v1548 = vpop.f32.mrb[0].mxu0
    %v1549 = vadd.f32 %v1508, %v1548
    %v1550 = vpop.f32.mrb[0].mxu0
    %1551 = vdwg.mxu0
    %v1552 = vmul.f32 %v814, 0.5
    %v1553 = vmul.f32 %v815, 0.5
    %v1554 = vadd.f32 %v1546, %v1552
    %v1555 = vadd.f32 %v1549, %v1553
    %1556 = vadd.xlane.f32.xlu0 %v1554
    %v1557 = vpop.xlane.xlu0 %1556
    %1558 = vadd.xlane.f32.xlu0 %v1555
    %v1559 = vpop.xlane.xlu0 %1558
    %v1560 = vmul.f32 %v1557, %v83
    %v1561 = vmul.f32 %v1559, %v83
    %v1562 = vmul.f32 %v1554, %v1554
    %v1563 = vmul.f32 %v1555, %v1555
    %1564 = vadd.xlane.f32.xlu0 %v1562
    %v1565 = vpop.xlane.xlu0 %1564
    %1566 = vadd.xlane.f32.xlu0 %v1563
    %v1567 = vpop.xlane.xlu0 %1566
    %v1568 = vmul.f32 %v1565, %v83
    %v1569 = vmul.f32 %v1567, %v83
    %v1570 = vsub.f32 %v1554, %v1560
    %v1571 = vsub.f32 %v1555, %v1561
    %v1572 = vmul.f32 %v1560, %v1560
    %v1573 = vmul.f32 %v1561, %v1561
    %v1574 = vsub.f32 %v1568, %v1572
    %v1575 = vsub.f32 %v1569, %v1573
    %v1576 = vadd.f32 %v1574, 1e-05
    %v1577 = vadd.f32 %v1575, 1e-05
    %v1578 = vrsqrt.pop %v1576
    %v1579 = vrsqrt.pop %v1577
    %v1580 = vmul.f32 %v1570, %v1578
    %v1581 = vmul.f32 %v1571, %v1579
    %v1582 = vpack.c.bf16 %v1581, %v1580
    %s1583 = scalar_lea.vmem [#allocation5], 512
    %v1584 = vld [vmem:[%s1583] sm:$0xff]
    %v1585 = vld [vmem:[%s1583 + $0x8] sm:$0xff]
    %v1586 = vld [vmem:[%s1583 + $0x10] sm:$0xff]
    %v1587 = vld [vmem:[%s1583 + $0x18] sm:$0xff]
    %v1588 = vld [vmem:[%s1583 + $0x20] sm:$0xff]
    %v1589 = vld [vmem:[%s1583 + $0x28] sm:$0xff]
    %v1590 = vld [vmem:[%s1583 + $0x30] sm:$0xff]
    %v1591 = vld [vmem:[%s1583 + $0x38] sm:$0xff]
    %v1592 = vld [vmem:[%s1583 + $0x40] sm:$0xff]
    %v1593 = vld [vmem:[%s1583 + $0x48] sm:$0xff]
    %v1594 = vld [vmem:[%s1583 + $0x50] sm:$0xff]
    %v1595 = vld [vmem:[%s1583 + $0x58] sm:$0xff]
    %v1596 = vld [vmem:[%s1583 + $0x60] sm:$0xff]
    %v1597 = vld [vmem:[%s1583 + $0x68] sm:$0xff]
    %v1598 = vld [vmem:[%s1583 + $0x70] sm:$0xff]
    %v1599 = vld [vmem:[%s1583 + $0x78] sm:$0xff]
    %v1600 = vld [vmem:[%s1583 + $0x80] sm:$0xff]
    %v1601 = vld [vmem:[%s1583 + $0x88] sm:$0xff]
    %v1602 = vld [vmem:[%s1583 + $0x90] sm:$0xff]
    %v1603 = vld [vmem:[%s1583 + $0x98] sm:$0xff]
    %v1604 = vld [vmem:[%s1583 + $0xa0] sm:$0xff]
    %v1605 = vld [vmem:[%s1583 + $0xa8] sm:$0xff]
    %v1606 = vld [vmem:[%s1583 + $0xb0] sm:$0xff]
    %v1607 = vld [vmem:[%s1583 + $0xb8] sm:$0xff]
    %v1608 = vld [vmem:[%s1583 + $0xc0] sm:$0xff]
    %v1609 = vld [vmem:[%s1583 + $0xc8] sm:$0xff]
    %v1610 = vld [vmem:[%s1583 + $0xd0] sm:$0xff]
    %v1611 = vld [vmem:[%s1583 + $0xd8] sm:$0xff]
    %v1612 = vld [vmem:[%s1583 + $0xe0] sm:$0xff]
    %v1613 = vld [vmem:[%s1583 + $0xe8] sm:$0xff]
    %v1614 = vld [vmem:[%s1583 + $0xf0] sm:$0xff]
    %v1615 = vld [vmem:[%s1583 + $0xf8] sm:$0xff]
    %s1616 = scalar_lea.vmem [#allocation7], 8
    %v1617 = vld [vmem:[%s1616] sm:$0xf]
    %v1619 = vlaneseq
    %v1620 = vshrl.u32 %v1619, 7
    %v1621 = vsub.s32 0, %v1620
    %v1622 = vrot.slane %v1617, %v1621
    %v1623 = vlaneseq
    %v1624 = vshrl.u32 %v1623, 7
    %v1625 = vsub.s32 1, %v1624
    %v1626 = vrot.slane %v1617, %v1625
    %v1627 = vlaneseq
    %v1628 = vshrl.u32 %v1627, 7
    %v1629 = vsub.s32 2, %v1628
    %v1630 = vrot.slane %v1617, %v1629
    %v1631 = vlaneseq
    %v1632 = vshrl.u32 %v1631, 7
    %v1633 = vsub.s32 3, %v1632
    %v1634 = vrot.slane %v1617, %v1633
    %v1671 = vunpack.c.l.b16 %v1584
    %v1672 = vunpack.c.h.b16 %v1584
    %v1673 = vunpack.c.l.b16 %v1585
    %v1674 = vunpack.c.h.b16 %v1585
    %v1675 = vunpack.c.l.b16 %v1586
    %v1676 = vunpack.c.h.b16 %v1586
    %v1677 = vunpack.c.l.b16 %v1587
    %v1678 = vunpack.c.h.b16 %v1587
    %v1679 = vunpack.c.l.b16 %v1588
    %v1680 = vunpack.c.h.b16 %v1588
    %v1681 = vunpack.c.l.b16 %v1589
    %v1682 = vunpack.c.h.b16 %v1589
    %v1683 = vunpack.c.l.b16 %v1590
    %v1684 = vunpack.c.h.b16 %v1590
    %v1685 = vunpack.c.l.b16 %v1591
    %v1686 = vunpack.c.h.b16 %v1591
    %v1687 = vunpack.c.l.b16 %v1592
    %v1688 = vunpack.c.h.b16 %v1592
    %v1689 = vunpack.c.l.b16 %v1593
    %v1690 = vunpack.c.h.b16 %v1593
    %v1691 = vunpack.c.l.b16 %v1594
    %v1692 = vunpack.c.h.b16 %v1594
    %v1693 = vunpack.c.l.b16 %v1595
    %v1694 = vunpack.c.h.b16 %v1595
    %v1695 = vunpack.c.l.b16 %v1596
    %v1696 = vunpack.c.h.b16 %v1596
    %v1697 = vunpack.c.l.b16 %v1597
    %v1698 = vunpack.c.h.b16 %v1597
    %v1699 = vunpack.c.l.b16 %v1598
    %v1700 = vunpack.c.h.b16 %v1598
    %v1701 = vunpack.c.l.b16 %v1599
    %v1702 = vunpack.c.h.b16 %v1599
    %v1703 = vunpack.c.l.b16 %v1600
    %v1704 = vunpack.c.h.b16 %v1600
    %v1705 = vunpack.c.l.b16 %v1601
    %v1706 = vunpack.c.h.b16 %v1601
    %v1707 = vunpack.c.l.b16 %v1602
    %v1708 = vunpack.c.h.b16 %v1602
    %v1709 = vunpack.c.l.b16 %v1603
    %v1710 = vunpack.c.h.b16 %v1603
    %v1711 = vunpack.c.l.b16 %v1604
    %v1712 = vunpack.c.h.b16 %v1604
    %v1713 = vunpack.c.l.b16 %v1605
    %v1714 = vunpack.c.h.b16 %v1605
    %v1715 = vunpack.c.l.b16 %v1606
    %v1716 = vunpack.c.h.b16 %v1606
    %v1717 = vunpack.c.l.b16 %v1607
    %v1718 = vunpack.c.h.b16 %v1607
    %v1719 = vunpack.c.l.b16 %v1608
    %v1720 = vunpack.c.h.b16 %v1608
    %v1721 = vunpack.c.l.b16 %v1609
    %v1722 = vunpack.c.h.b16 %v1609
    %v1723 = vunpack.c.l.b16 %v1610
    %v1724 = vunpack.c.h.b16 %v1610
    %v1725 = vunpack.c.l.b16 %v1611
    %v1726 = vunpack.c.h.b16 %v1611
    %v1727 = vunpack.c.l.b16 %v1612
    %v1728 = vunpack.c.h.b16 %v1612
    %v1729 = vunpack.c.l.b16 %v1613
    %v1730 = vunpack.c.h.b16 %v1613
    %v1731 = vunpack.c.l.b16 %v1614
    %v1732 = vunpack.c.h.b16 %v1614
    %v1733 = vunpack.c.l.b16 %v1615
    %v1734 = vunpack.c.h.b16 %v1615
    %v1735 = vpack.c.b16 %v1675, %v1671
    %v1736 = vpack.c.b16 %v1676, %v1672
    %v1737 = vpack.c.b16 %v1677, %v1673
    %v1738 = vpack.c.b16 %v1678, %v1674
    %v1739 = vpack.c.b16 %v1683, %v1679
    %v1740 = vpack.c.b16 %v1684, %v1680
    %v1741 = vpack.c.b16 %v1685, %v1681
    %v1742 = vpack.c.b16 %v1686, %v1682
    %v1743 = vpack.c.b16 %v1691, %v1687
    %v1744 = vpack.c.b16 %v1692, %v1688
    %v1745 = vpack.c.b16 %v1693, %v1689
    %v1746 = vpack.c.b16 %v1694, %v1690
    %v1747 = vpack.c.b16 %v1699, %v1695
    %v1748 = vpack.c.b16 %v1700, %v1696
    %v1749 = vpack.c.b16 %v1701, %v1697
    %v1750 = vpack.c.b16 %v1702, %v1698
    %v1751 = vpack.c.b16 %v1707, %v1703
    %v1752 = vpack.c.b16 %v1708, %v1704
    %v1753 = vpack.c.b16 %v1709, %v1705
    %v1754 = vpack.c.b16 %v1710, %v1706
    %v1755 = vpack.c.b16 %v1715, %v1711
    %v1756 = vpack.c.b16 %v1716, %v1712
    %v1757 = vpack.c.b16 %v1717, %v1713
    %v1758 = vpack.c.b16 %v1718, %v1714
    %v1759 = vpack.c.b16 %v1723, %v1719
    %v1760 = vpack.c.b16 %v1724, %v1720
    %v1761 = vpack.c.b16 %v1725, %v1721
    %v1762 = vpack.c.b16 %v1726, %v1722
    %v1763 = vpack.c.b16 %v1731, %v1727
    %v1764 = vpack.c.b16 %v1732, %v1728
    %v1765 = vpack.c.b16 %v1733, %v1729
    %v1766 = vpack.c.b16 %v1734, %v1730
    %1799 = vmatprep.subr.bf16.mxu0 %v1736
    %1800 = vmatpush1.bf16.msra.mxu0 %v1735
    %1801 = vmatprep.subr.bf16.mxu0 %v1740
    %1802 = vmatpush1.bf16.msra.mxu0 %v1739
    %1803 = vmatprep.subr.bf16.mxu0 %v1744
    %1804 = vmatpush1.bf16.msra.mxu0 %v1743
    %1805 = vmatprep.subr.bf16.mxu0 %v1748
    %1806 = vmatpush1.bf16.msra.mxu0 %v1747
    %1807 = vmatprep.subr.bf16.mxu0 %v1752
    %1808 = vmatpush1.bf16.msra.mxu0 %v1751
    %1809 = vmatprep.subr.bf16.mxu0 %v1756
    %1810 = vmatpush1.bf16.msra.mxu0 %v1755
    %1811 = vmatprep.subr.bf16.mxu0 %v1760
    %1812 = vmatpush1.bf16.msra.mxu0 %v1759
    %1813 = vmatprep.subr.bf16.mxu0 %v1764
    %1814 = vmatpush1.bf16.msra.mxu0 %v1763
    %1815 = vmatprep.subr.bf16.mxu0 0
    %1816 = vmatpush1.bf16.msra.mxu0 0
    %1817 = vmatprep.subr.bf16.mxu0 0
    %1818 = vmatpush1.bf16.msra.mxu0 0
    %1819 = vmatprep.subr.bf16.mxu0 0
    %1820 = vmatpush1.bf16.msra.mxu0 0
    %1821 = vmatprep.subr.bf16.mxu0 0
    %1822 = vmatpush1.bf16.msra.mxu0 0
    %1823 = vmatprep.subr.bf16.mxu0 0
    %1824 = vmatpush1.bf16.msra.mxu0 0
    %1825 = vmatprep.subr.bf16.mxu0 0
    %1826 = vmatpush1.bf16.msra.mxu0 0
    %1827 = vmatprep.subr.bf16.mxu0 0
    %1828 = vmatpush1.bf16.msra.mxu0 0
    %1829 = vmatprep.subr.bf16.mxu0 0
    %1830 = vmatpush1.bf16.msra.mxu0 0
    %1831 = vmatprep.mubr.bf16.mxu0 0
    %1832 = vmatmul.mubr.bf16.gmra.mrb[0].mxu0 %v1582
    %v1833 = vpop.f32.mrb[0].mxu0
    %v1834 = vadd.f32 %v1622, %v1833
    %v1835 = vpop.f32.mrb[0].mxu0
    %v1836 = vadd.f32 %v1626, %v1835
    %v1837 = vpop.f32.mrb[0].mxu0
    %v1838 = vadd.f32 %v1622, %v1837
    %v1839 = vpop.f32.mrb[0].mxu0
    %v1840 = vadd.f32 %v1626, %v1839
    %1841 = vdwg.mxu0
    %1842 = vmatprep.subr.bf16.mxu0 %v1738
    %1843 = vmatpush1.bf16.msra.mxu0 %v1737
    %1844 = vmatprep.subr.bf16.mxu0 %v1742
    %1845 = vmatpush1.bf16.msra.mxu0 %v1741
    %1846 = vmatprep.subr.bf16.mxu0 %v1746
    %1847 = vmatpush1.bf16.msra.mxu0 %v1745
    %1848 = vmatprep.subr.bf16.mxu0 %v1750
    %1849 = vmatpush1.bf16.msra.mxu0 %v1749
    %1850 = vmatprep.subr.bf16.mxu0 %v1754
    %1851 = vmatpush1.bf16.msra.mxu0 %v1753
    %1852 = vmatprep.subr.bf16.mxu0 %v1758
    %1853 = vmatpush1.bf16.msra.mxu0 %v1757
    %1854 = vmatprep.subr.bf16.mxu0 %v1762
    %1855 = vmatpush1.bf16.msra.mxu0 %v1761
    %1856 = vmatprep.subr.bf16.mxu0 %v1766
    %1857 = vmatpush1.bf16.msra.mxu0 %v1765
    %1858 = vmatprep.subr.bf16.mxu0 0
    %1859 = vmatpush1.bf16.msra.mxu0 0
    %1860 = vmatprep.subr.bf16.mxu0 0
    %1861 = vmatpush1.bf16.msra.mxu0 0
    %1862 = vmatprep.subr.bf16.mxu0 0
    %1863 = vmatpush1.bf16.msra.mxu0 0
    %1864 = vmatprep.subr.bf16.mxu0 0
    %1865 = vmatpush1.bf16.msra.mxu0 0
    %1866 = vmatprep.subr.bf16.mxu0 0
    %1867 = vmatpush1.bf16.msra.mxu0 0
    %1868 = vmatprep.subr.bf16.mxu0 0
    %1869 = vmatpush1.bf16.msra.mxu0 0
    %1870 = vmatprep.subr.bf16.mxu0 0
    %1871 = vmatpush1.bf16.msra.mxu0 0
    %1872 = vmatprep.subr.bf16.mxu0 0
    %1873 = vmatpush1.bf16.msra.mxu0 0
    %1874 = vmatprep.mubr.bf16.mxu0 0
    %1875 = vmatmul.mubr.bf16.gmra.mrb[0].mxu0 %v1582
    %v1876 = vpop.f32.mrb[0].mxu0
    %v1877 = vadd.f32 %v1630, %v1876
    %v1878 = vpop.f32.mrb[0].mxu0
    %v1879 = vadd.f32 %v1634, %v1878
    %v1880 = vpop.f32.mrb[0].mxu0
    %v1881 = vadd.f32 %v1630, %v1880
    %v1882 = vpop.f32.mrb[0].mxu0
    %v1883 = vadd.f32 %v1634, %v1882
    %1884 = vdwg.mxu0
    %v1885 = vxor.u32 %v1834, 2147483648
    %v1886 = vxor.u32 %v1836, 2147483648
    %v1887 = vxor.u32 %v1877, 2147483648
    %v1888 = vxor.u32 %v1879, 2147483648
    %v1889 = vxor.u32 %v1838, 2147483648
    %v1890 = vxor.u32 %v1840, 2147483648
    %v1891 = vxor.u32 %v1881, 2147483648
    %v1892 = vxor.u32 %v1883, 2147483648
    %v1893 = vmul.f32 %v1885, 1.442695
    %v1894 = vpow.pop %v1893
    %v1895 = vmul.f32 %v1886, 1.442695
    %v1896 = vpow.pop %v1895
    %v1897 = vmul.f32 %v1887, 1.442695
    %v1898 = vpow.pop %v1897
    %v1899 = vmul.f32 %v1888, 1.442695
    %v1900 = vpow.pop %v1899
    %v1901 = vmul.f32 %v1889, 1.442695
    %v1902 = vpow.pop %v1901
    %v1903 = vmul.f32 %v1890, 1.442695
    %v1904 = vpow.pop %v1903
    %v1905 = vmul.f32 %v1891, 1.442695
    %v1906 = vpow.pop %v1905
    %v1907 = vmul.f32 %v1892, 1.442695
    %v1908 = vpow.pop %v1907
    %v1909 = vadd.f32 %v1894, 1.0
    %v1910 = vadd.f32 %v1896, 1.0
    %v1911 = vadd.f32 %v1898, 1.0
    %v1912 = vadd.f32 %v1900, 1.0
    %v1913 = vadd.f32 %v1902, 1.0
    %v1914 = vadd.f32 %v1904, 1.0
    %v1915 = vadd.f32 %v1906, 1.0
    %v1916 = vadd.f32 %v1908, 1.0
    %v1917 = vrcp.pop %v1909
    %v1918 = vmul.f32 1.0, %v1917
    %v1919 = vrcp.pop %v1910
    %v1920 = vmul.f32 1.0, %v1919
    %v1921 = vrcp.pop %v1911
    %v1922 = vmul.f32 1.0, %v1921
    %v1923 = vrcp.pop %v1912
    %v1924 = vmul.f32 1.0, %v1923
    %v1925 = vrcp.pop %v1913
    %v1926 = vmul.f32 1.0, %v1925
    %v1927 = vrcp.pop %v1914
    %v1928 = vmul.f32 1.0, %v1927
    %v1929 = vrcp.pop %v1915
    %v1930 = vmul.f32 1.0, %v1929
    %v1931 = vrcp.pop %v1916
    %v1932 = vmul.f32 1.0, %v1931
    %v1933 = vmul.f32 %v1834, %v1918
    %v1934 = vmul.f32 %v1836, %v1920
    %v1935 = vmul.f32 %v1877, %v1922
    %v1936 = vmul.f32 %v1879, %v1924
    %v1937 = vmul.f32 %v1838, %v1926
    %v1938 = vmul.f32 %v1840, %v1928
    %v1939 = vmul.f32 %v1881, %v1930
    %v1940 = vmul.f32 %v1883, %v1932
    %v1941 = vpack.c.bf16 %v1937, %v1933
    %v1942 = vpack.c.bf16 %v1938, %v1934
    %v1943 = vpack.c.bf16 %v1939, %v1935
    %v1944 = vpack.c.bf16 %v1940, %v1936
    %s1945 = scalar_lea.vmem [#allocation8], 512
    %v1946 = vld [vmem:[%s1945] sm:$0xf]
    %v1947 = vld [vmem:[%s1945 + $0x4] sm:$0xf]
    %v1948 = vld [vmem:[%s1945 + $0x8] sm:$0xf]
    %v1949 = vld [vmem:[%s1945 + $0xc] sm:$0xf]
    %v1950 = vld [vmem:[%s1945 + $0x10] sm:$0xf]
    %v1951 = vld [vmem:[%s1945 + $0x14] sm:$0xf]
    %v1952 = vld [vmem:[%s1945 + $0x18] sm:$0xf]
    %v1953 = vld [vmem:[%s1945 + $0x1c] sm:$0xf]
    %v1954 = vld [vmem:[%s1945 + $0x20] sm:$0xf]
    %v1955 = vld [vmem:[%s1945 + $0x24] sm:$0xf]
    %v1956 = vld [vmem:[%s1945 + $0x28] sm:$0xf]
    %v1957 = vld [vmem:[%s1945 + $0x2c] sm:$0xf]
    %v1958 = vld [vmem:[%s1945 + $0x30] sm:$0xf]
    %v1959 = vld [vmem:[%s1945 + $0x34] sm:$0xf]
    %v1960 = vld [vmem:[%s1945 + $0x38] sm:$0xf]
    %v1961 = vld [vmem:[%s1945 + $0x3c] sm:$0xf]
    %v1962 = vld [vmem:[%s1945 + $0x40] sm:$0xf]
    %v1963 = vld [vmem:[%s1945 + $0x44] sm:$0xf]
    %v1964 = vld [vmem:[%s1945 + $0x48] sm:$0xf]
    %v1965 = vld [vmem:[%s1945 + $0x4c] sm:$0xf]
    %v1966 = vld [vmem:[%s1945 + $0x50] sm:$0xf]
    %v1967 = vld [vmem:[%s1945 + $0x54] sm:$0xf]
    %v1968 = vld [vmem:[%s1945 + $0x58] sm:$0xf]
    %v1969 = vld [vmem:[%s1945 + $0x5c] sm:$0xf]
    %v1970 = vld [vmem:[%s1945 + $0x60] sm:$0xf]
    %v1971 = vld [vmem:[%s1945 + $0x64] sm:$0xf]
    %v1972 = vld [vmem:[%s1945 + $0x68] sm:$0xf]
    %v1973 = vld [vmem:[%s1945 + $0x6c] sm:$0xf]
    %v1974 = vld [vmem:[%s1945 + $0x70] sm:$0xf]
    %v1975 = vld [vmem:[%s1945 + $0x74] sm:$0xf]
    %v1976 = vld [vmem:[%s1945 + $0x78] sm:$0xf]
    %v1977 = vld [vmem:[%s1945 + $0x7c] sm:$0xf]
    %v1978 = vld [vmem:[%s1945 + $0x80] sm:$0xf]
    %v1979 = vld [vmem:[%s1945 + $0x84] sm:$0xf]
    %v1980 = vld [vmem:[%s1945 + $0x88] sm:$0xf]
    %v1981 = vld [vmem:[%s1945 + $0x8c] sm:$0xf]
    %v1982 = vld [vmem:[%s1945 + $0x90] sm:$0xf]
    %v1983 = vld [vmem:[%s1945 + $0x94] sm:$0xf]
    %v1984 = vld [vmem:[%s1945 + $0x98] sm:$0xf]
    %v1985 = vld [vmem:[%s1945 + $0x9c] sm:$0xf]
    %v1986 = vld [vmem:[%s1945 + $0xa0] sm:$0xf]
    %v1987 = vld [vmem:[%s1945 + $0xa4] sm:$0xf]
    %v1988 = vld [vmem:[%s1945 + $0xa8] sm:$0xf]
    %v1989 = vld [vmem:[%s1945 + $0xac] sm:$0xf]
    %v1990 = vld [vmem:[%s1945 + $0xb0] sm:$0xf]
    %v1991 = vld [vmem:[%s1945 + $0xb4] sm:$0xf]
    %v1992 = vld [vmem:[%s1945 + $0xb8] sm:$0xf]
    %v1993 = vld [vmem:[%s1945 + $0xbc] sm:$0xf]
    %v1994 = vld [vmem:[%s1945 + $0xc0] sm:$0xf]
    %v1995 = vld [vmem:[%s1945 + $0xc4] sm:$0xf]
    %v1996 = vld [vmem:[%s1945 + $0xc8] sm:$0xf]
    %v1997 = vld [vmem:[%s1945 + $0xcc] sm:$0xf]
    %v1998 = vld [vmem:[%s1945 + $0xd0] sm:$0xf]
    %v1999 = vld [vmem:[%s1945 + $0xd4] sm:$0xf]
    %v2000 = vld [vmem:[%s1945 + $0xd8] sm:$0xf]
    %v2001 = vld [vmem:[%s1945 + $0xdc] sm:$0xf]
    %v2002 = vld [vmem:[%s1945 + $0xe0] sm:$0xf]
    %v2003 = vld [vmem:[%s1945 + $0xe4] sm:$0xf]
    %v2004 = vld [vmem:[%s1945 + $0xe8] sm:$0xf]
    %v2005 = vld [vmem:[%s1945 + $0xec] sm:$0xf]
    %v2006 = vld [vmem:[%s1945 + $0xf0] sm:$0xf]
    %v2007 = vld [vmem:[%s1945 + $0xf4] sm:$0xf]
    %v2008 = vld [vmem:[%s1945 + $0xf8] sm:$0xf]
    %v2009 = vld [vmem:[%s1945 + $0xfc] sm:$0xf]
    %s2010 = scalar_lea.vmem %s4, 2
    %v2011 = vld [vmem:[%s2010] sm:$0x1]
    %v2013 = vlaneseq
    %v2014 = vshrl.u32 %v2013, 7
    %v2015 = vsub.s32 0, %v2014
    %v2016 = vrot.slane %v2011, %v2015
    %v2082 = vunpack.c.l.b16 %v1946
    %v2083 = vunpack.c.l.b16 %v1947
    %v2084 = vunpack.c.l.b16 %v1948
    %v2085 = vunpack.c.l.b16 %v1949
    %v2086 = vunpack.c.l.b16 %v1950
    %v2087 = vunpack.c.l.b16 %v1951
    %v2088 = vunpack.c.l.b16 %v1952
    %v2089 = vunpack.c.l.b16 %v1953
    %v2090 = vunpack.c.l.b16 %v1954
    %v2091 = vunpack.c.l.b16 %v1955
    %v2092 = vunpack.c.l.b16 %v1956
    %v2093 = vunpack.c.l.b16 %v1957
    %v2094 = vunpack.c.l.b16 %v1958
    %v2095 = vunpack.c.l.b16 %v1959
    %v2096 = vunpack.c.l.b16 %v1960
    %v2097 = vunpack.c.l.b16 %v1961
    %v2098 = vunpack.c.l.b16 %v1962
    %v2099 = vunpack.c.l.b16 %v1963
    %v2100 = vunpack.c.l.b16 %v1964
    %v2101 = vunpack.c.l.b16 %v1965
    %v2102 = vunpack.c.l.b16 %v1966
    %v2103 = vunpack.c.l.b16 %v1967
    %v2104 = vunpack.c.l.b16 %v1968
    %v2105 = vunpack.c.l.b16 %v1969
    %v2106 = vunpack.c.l.b16 %v1970
    %v2107 = vunpack.c.l.b16 %v1971
    %v2108 = vunpack.c.l.b16 %v1972
    %v2109 = vunpack.c.l.b16 %v1973
    %v2110 = vunpack.c.l.b16 %v1974
    %v2111 = vunpack.c.l.b16 %v1975
    %v2112 = vunpack.c.l.b16 %v1976
    %v2113 = vunpack.c.l.b16 %v1977
    %v2114 = vunpack.c.l.b16 %v1978
    %v2115 = vunpack.c.l.b16 %v1979
    %v2116 = vunpack.c.l.b16 %v1980
    %v2117 = vunpack.c.l.b16 %v1981
    %v2118 = vunpack.c.l.b16 %v1982
    %v2119 = vunpack.c.l.b16 %v1983
    %v2120 = vunpack.c.l.b16 %v1984
    %v2121 = vunpack.c.l.b16 %v1985
    %v2122 = vunpack.c.l.b16 %v1986
    %v2123 = vunpack.c.l.b16 %v1987
    %v2124 = vunpack.c.l.b16 %v1988
    %v2125 = vunpack.c.l.b16 %v1989
    %v2126 = vunpack.c.l.b16 %v1990
    %v2127 = vunpack.c.l.b16 %v1991
    %v2128 = vunpack.c.l.b16 %v1992
    %v2129 = vunpack.c.l.b16 %v1993
    %v2130 = vunpack.c.l.b16 %v1994
    %v2131 = vunpack.c.l.b16 %v1995
    %v2132 = vunpack.c.l.b16 %v1996
    %v2133 = vunpack.c.l.b16 %v1997
    %v2134 = vunpack.c.l.b16 %v1998
    %v2135 = vunpack.c.l.b16 %v1999
    %v2136 = vunpack.c.l.b16 %v2000
    %v2137 = vunpack.c.l.b16 %v2001
    %v2138 = vunpack.c.l.b16 %v2002
    %v2139 = vunpack.c.l.b16 %v2003
    %v2140 = vunpack.c.l.b16 %v2004
    %v2141 = vunpack.c.l.b16 %v2005
    %v2142 = vunpack.c.l.b16 %v2006
    %v2143 = vunpack.c.l.b16 %v2007
    %v2144 = vunpack.c.l.b16 %v2008
    %v2145 = vunpack.c.l.b16 %v2009
    %v2146 = vpack.c.b16 %v2083, %v2082
    %v2147 = vpack.c.b16 %v2085, %v2084
    %v2148 = vpack.c.b16 %v2087, %v2086
    %v2149 = vpack.c.b16 %v2089, %v2088
    %v2150 = vpack.c.b16 %v2091, %v2090
    %v2151 = vpack.c.b16 %v2093, %v2092
    %v2152 = vpack.c.b16 %v2095, %v2094
    %v2153 = vpack.c.b16 %v2097, %v2096
    %v2154 = vpack.c.b16 %v2099, %v2098
    %v2155 = vpack.c.b16 %v2101, %v2100
    %v2156 = vpack.c.b16 %v2103, %v2102
    %v2157 = vpack.c.b16 %v2105, %v2104
    %v2158 = vpack.c.b16 %v2107, %v2106
    %v2159 = vpack.c.b16 %v2109, %v2108
    %v2160 = vpack.c.b16 %v2111, %v2110
    %v2161 = vpack.c.b16 %v2113, %v2112
    %v2162 = vpack.c.b16 %v2115, %v2114
    %v2163 = vpack.c.b16 %v2117, %v2116
    %v2164 = vpack.c.b16 %v2119, %v2118
    %v2165 = vpack.c.b16 %v2121, %v2120
    %v2166 = vpack.c.b16 %v2123, %v2122
    %v2167 = vpack.c.b16 %v2125, %v2124
    %v2168 = vpack.c.b16 %v2127, %v2126
    %v2169 = vpack.c.b16 %v2129, %v2128
    %v2170 = vpack.c.b16 %v2131, %v2130
    %v2171 = vpack.c.b16 %v2133, %v2132
    %v2172 = vpack.c.b16 %v2135, %v2134
    %v2173 = vpack.c.b16 %v2137, %v2136
    %v2174 = vpack.c.b16 %v2139, %v2138
    %v2175 = vpack.c.b16 %v2141, %v2140
    %v2176 = vpack.c.b16 %v2143, %v2142
    %v2177 = vpack.c.b16 %v2145, %v2144
    %2210 = vmatprep.subr.bf16.mxu0 0
    %2211 = vmatpush1.bf16.msra.mxu0 %v2146
    %2212 = vmatprep.subr.bf16.mxu0 0
    %2213 = vmatpush1.bf16.msra.mxu0 %v2147
    %2214 = vmatprep.subr.bf16.mxu0 0
    %2215 = vmatpush1.bf16.msra.mxu0 %v2148
    %2216 = vmatprep.subr.bf16.mxu0 0
    %2217 = vmatpush1.bf16.msra.mxu0 %v2149
    %2218 = vmatprep.subr.bf16.mxu0 0
    %2219 = vmatpush1.bf16.msra.mxu0 %v2150
    %2220 = vmatprep.subr.bf16.mxu0 0
    %2221 = vmatpush1.bf16.msra.mxu0 %v2151
    %2222 = vmatprep.subr.bf16.mxu0 0
    %2223 = vmatpush1.bf16.msra.mxu0 %v2152
    %2224 = vmatprep.subr.bf16.mxu0 0
    %2225 = vmatpush1.bf16.msra.mxu0 %v2153
    %2226 = vmatprep.subr.bf16.mxu0 0
    %2227 = vmatpush1.bf16.msra.mxu0 %v2154
    %2228 = vmatprep.subr.bf16.mxu0 0
    %2229 = vmatpush1.bf16.msra.mxu0 %v2155
    %2230 = vmatprep.subr.bf16.mxu0 0
    %2231 = vmatpush1.bf16.msra.mxu0 %v2156
    %2232 = vmatprep.subr.bf16.mxu0 0
    %2233 = vmatpush1.bf16.msra.mxu0 %v2157
    %2234 = vmatprep.subr.bf16.mxu0 0
    %2235 = vmatpush1.bf16.msra.mxu0 %v2158
    %2236 = vmatprep.subr.bf16.mxu0 0
    %2237 = vmatpush1.bf16.msra.mxu0 %v2159
    %2238 = vmatprep.subr.bf16.mxu0 0
    %2239 = vmatpush1.bf16.msra.mxu0 %v2160
    %2240 = vmatprep.subr.bf16.mxu0 0
    %2241 = vmatpush1.bf16.msra.mxu0 %v2161
    %2242 = vmatprep.mubr.bf16.mxu0 %v1942
    %2243 = vmatmul.mubr.bf16.gmra.mrb[0].mxu0 %v1941
    %v2244 = vpop.f32.mrb[0].mxu0
    %v2245 = vadd.f32 %v2016, %v2244
    %v2246 = vpop.f32.mrb[0].mxu0
    %v2247 = vpop.f32.mrb[0].mxu0
    %v2248 = vadd.f32 %v2016, %v2247
    %v2249 = vpop.f32.mrb[0].mxu0
    %2250 = vdwg.mxu0
    %2251 = vmatprep.subr.bf16.mxu0 0
    %2252 = vmatpush1.bf16.msra.mxu0 %v2162
    %2253 = vmatprep.subr.bf16.mxu0 0
    %2254 = vmatpush1.bf16.msra.mxu0 %v2163
    %2255 = vmatprep.subr.bf16.mxu0 0
    %2256 = vmatpush1.bf16.msra.mxu0 %v2164
    %2257 = vmatprep.subr.bf16.mxu0 0
    %2258 = vmatpush1.bf16.msra.mxu0 %v2165
    %2259 = vmatprep.subr.bf16.mxu0 0
    %2260 = vmatpush1.bf16.msra.mxu0 %v2166
    %2261 = vmatprep.subr.bf16.mxu0 0
    %2262 = vmatpush1.bf16.msra.mxu0 %v2167
    %2263 = vmatprep.subr.bf16.mxu0 0
    %2264 = vmatpush1.bf16.msra.mxu0 %v2168
    %2265 = vmatprep.subr.bf16.mxu0 0
    %2266 = vmatpush1.bf16.msra.mxu0 %v2169
    %2267 = vmatprep.subr.bf16.mxu0 0
    %2268 = vmatpush1.bf16.msra.mxu0 %v2170
    %2269 = vmatprep.subr.bf16.mxu0 0
    %2270 = vmatpush1.bf16.msra.mxu0 %v2171
    %2271 = vmatprep.subr.bf16.mxu0 0
    %2272 = vmatpush1.bf16.msra.mxu0 %v2172
    %2273 = vmatprep.subr.bf16.mxu0 0
    %2274 = vmatpush1.bf16.msra.mxu0 %v2173
    %2275 = vmatprep.subr.bf16.mxu0 0
    %2276 = vmatpush1.bf16.msra.mxu0 %v2174
    %2277 = vmatprep.subr.bf16.mxu0 0
    %2278 = vmatpush1.bf16.msra.mxu0 %v2175
    %2279 = vmatprep.subr.bf16.mxu0 0
    %2280 = vmatpush1.bf16.msra.mxu0 %v2176
    %2281 = vmatprep.subr.bf16.mxu0 0
    %2282 = vmatpush1.bf16.msra.mxu0 %v2177
    %2283 = vmatprep.mubr.bf16.mxu0 %v1944
    %2284 = vmatmul.mubr.bf16.gmra.mrb[0].mxu0 %v1943
    %v2285 = vpop.f32.mrb[0].mxu0
    %v2286 = vadd.f32 %v2245, %v2285
    %v2287 = vpop.f32.mrb[0].mxu0
    %v2288 = vpop.f32.mrb[0].mxu0
    %v2289 = vadd.f32 %v2248, %v2288
    %v2290 = vpop.f32.mrb[0].mxu0
    %2291 = vdwg.mxu0
    %v2292 = vmul.f32 %v1554, 0.5
    %v2293 = vmul.f32 %v1555, 0.5
    %v2294 = vadd.f32 %v2286, %v2292
    %v2295 = vadd.f32 %v2289, %v2293
    %2296 = vst [vmem:[#allocation10] sm:$0xff] %v2294
    %2297 = vst [vmem:[#allocation10 + $0x8] sm:$0xff] %v2295
    // Predicated region
    $region38: #{tpu_custom_call.1} parent=1 // pred_check
      _
    $region39: #{tpu_custom_call.1} parent=1 // pred_check_branch
      %2299 = sbr.rel (0) target = $region41
    $region40: #{tpu_custom_call.1} parent=1 // pred_region
      %s2301 = ssub.s32 256, 256
      %2302 = vsyncadd [#allocation4], %s2301
      %s2303 = sshll.u32 [#allocation10], 4
      %s2304 = int_to_ptr.vmem [resolvable:$true] %s2303
      %2309 = dma.vmem_to_hbm [thread:$0]  %s2304, 256, %s5, [#allocation4], 128, 128, 8
    $region41: #{tpu_custom_call.1} parent=1 // pred_fallthru
      _
    // Predicated region
    $region42: #{tpu_custom_call.1} parent=1 // pred_check
      _
    $region43: #{tpu_custom_call.1} parent=1 // pred_check_branch
      %2311 = sbr.rel (0) target = $region45
    $region44: #{tpu_custom_call.1} parent=1 // pred_region
      %2312 = dma.done [#allocation4], 256
    $region45: #{tpu_custom_call.1} parent=1 // pred_fallthru
      _
    %2313 = vsyncpa [#allocation3], 1
    %2314 = vsyncpa [#allocation6], 1
    %2315 = vsyncpa [#allocation9], 1
    %2316 = vsyncpa [#allocation4], 1

</llo_original>
